<compile_context>
chip_gen: v7x
topology: tpu7x:2x2x1
jax: 0.10.0
libtpu: 0.0.40
codegen_flags: <defaults>
</compile_context>

<pallas_src>
import functools
import math

import jax
import jax.numpy as jnp
from jax.experimental import pallas as pl
from jax.experimental.pallas import tpu as pltpu


def upblock_kernel(N, Cpad, KH, KW, P, Ho, Wo,
                   x_ref, m_ref, w_ref, g_ref, beta_ref, o_ref, p_scr):
    # x_ref:    (N*Cpad, H*W)         bf16  channel-padded, spatially flattened input
    # m_ref:    (H*W, Lpad)           bf16  folded upsample + pad operator (lane-padded)
    # w_ref:    (Cout, KH*KW*Cpad)    bf16  conv weights, tap-major / channel-minor
    # g_ref:    (Cout, 1)             f32   batchnorm gamma
    # beta_ref: (Cout, 1)             f32   batchnorm beta
    # o_ref:    (Cout, N*Ho*Wo)       f32   output (lane-dense, images side by side)
    # p_scr:    (KH*KW*Cpad, N*Ho*Wo) f32   stacked conv-tap patches (tile-aligned)
    HoWo = Ho * Wo

    # ---- Stage 1: bilinear upsample + zero pad, ONE batched matmul ----
    ug = jnp.dot(x_ref[...], m_ref[...],
                 preferred_element_type=jnp.float32)            # (N*Cpad, Lpad) f32

    # Width-edge validity (the conv's zero padding along W lives here, because
    # the flattened padded map only stores the Wo interior columns per row).
    col = jax.lax.broadcasted_iota(jnp.int32, (1, HoWo), 1)
    if (Wo & (Wo - 1)) == 0:
        wo_idx = col & (Wo - 1)                                 # power-of-two fast path
    else:
        wo_idx = col % Wo

    # ---- Stage 2: extract the KH*KW conv taps as static lane-offset slices ----
    for kh in range(KH):
        for kw in range(KW):
            k = kh * KW + kw
            start = kh * Wo + kw                                # constant flat offset
            sl = ug[:, start:start + HoWo]                      # (N*Cpad, HoWo)
            if kw < P:
                sl = jnp.where(wo_idx >= (P - kw), sl, 0.0)
            elif kw > P:
                sl = jnp.where(wo_idx <= (Wo - 1 + P - kw), sl, 0.0)
            for n in range(N):                                  # small static unroll
                p_scr[k * Cpad:(k + 1) * Cpad, n * HoWo:(n + 1) * HoWo] = (
                    sl[n * Cpad:(n + 1) * Cpad, :])

    # ---- Stage 3: fused conv — all taps, channels and images in ONE matmul ----
    y = jnp.dot(w_ref[...], p_scr[...].astype(jnp.bfloat16),
                preferred_element_type=jnp.float32)             # (Cout, N*HoWo)
    # NOTE: conv bias dropped on purpose — exactly cancelled by training-mode BN.

    # ---- Stage 4: BatchNorm2d (training-mode batch stats) + ReLU, fused affine ----
    inv_count = 1.0 / float(N * HoWo)
    mean = jnp.sum(y, axis=1, keepdims=True) * inv_count        # (Cout, 1)
    ex2 = jnp.sum(y * y, axis=1, keepdims=True) * inv_count
    var = ex2 - mean * mean                                     # biased variance
    scale = g_ref[...] * jax.lax.rsqrt(var + 1e-5)
    shift = beta_ref[...] - mean * scale
    o_ref[...] = jnp.maximum(y * scale + shift, 0.0)


def _bilinear_matrix(in_size, scale):
    """Row-interpolation matrix of nn.Upsample(scale_factor=scale, mode='bilinear',
    align_corners=False): out = mat @ in  along one spatial axis."""
    out_size = in_size * scale
    mat = [[0.0] * in_size for _ in range(out_size)]
    for q in range(out_size):
        src = (q + 0.5) / scale - 0.5
        if src < 0.0:
            src = 0.0
        i0 = int(math.floor(src))
        i1 = min(i0 + 1, in_size - 1)
        l1 = src - i0
        mat[q][i0] += 1.0 - l1
        mat[q][i1] += l1
    return jnp.array(mat, dtype=jnp.float32)


def make_upblock_params(key, in_channels, out_channels, kernel_size=3):
    kw_, kb_ = jax.random.split(key)
    fan_in = in_channels * kernel_size * kernel_size
    bound = 1.0 / math.sqrt(fan_in)
    w = jax.random.uniform(
        kw_, (out_channels, in_channels, kernel_size, kernel_size),
        jnp.float32, -bound, bound)
    b = jax.random.uniform(kb_, (out_channels,), jnp.float32, -bound, bound)
    gamma = jnp.ones((out_channels,), jnp.float32)   # BatchNorm2d default init
    beta = jnp.zeros((out_channels,), jnp.float32)
    return {"w": w, "b": b, "gamma": gamma, "beta": beta}


@functools.partial(jax.jit, static_argnames=("stride", "padding"))
def upblock_forward(x, params, stride=2, padding=1):
    N, Cin, H, W = x.shape
    w = params["w"]
    Cout, _, KH, KW = w.shape
    assert KH == KW and KH % 2 == 1 and padding == (KH - 1) // 2, \
        "folded-operator kernel assumes an odd 'same' convolution"
    P = padding
    Ho, Wo = H * stride, W * stride
    HoWo = Ho * Wo
    Cpad = ((Cin + 7) // 8) * 8                     # pad channels to 8 sublanes

    # ---- parameter setup (glue, traced once under jit) ----
    # 1-D bilinear interpolation matrices (align_corners=False).
    a_h = _bilinear_matrix(H, stride)               # (Ho, H)
    a_w = _bilinear_matrix(W, stride)               # (Wo, W)

    # Fold upsample + zero padding (P zero rows each side + P flat guard elems)
    # into one operator.  Bilinear weights are exact in bf16.
    mup_core = jnp.kron(a_h, a_w).T                 # (H*W, Ho*Wo)
    pad_cols = P * (Wo + 1)
    Lg = HoWo + 2 * pad_cols
    Lpad = ((Lg + 127) // 128) * 128                # lane-dense operand / result
    mup = jnp.pad(mup_core,
                  ((0, 0), (pad_cols, pad_cols + (Lpad - Lg)))).astype(jnp.bfloat16)

    # Inputs: channel-pad to Cpad sublanes, flatten spatial, cast to bf16.
    xp = jnp.pad(x, ((0, 0), (0, Cpad - Cin), (0, 0), (0, 0)))
    xf = xp.reshape(N * Cpad, H * W).astype(jnp.bfloat16)

    # Conv weights arranged tap-major / channel-minor to match the patch rows.
    wk = jnp.transpose(w, (0, 2, 3, 1))                              # (Cout, KH, KW, Cin)
    wk = jnp.pad(wk, ((0, 0), (0, 0), (0, 0), (0, Cpad - Cin)))
    wfold = wk.reshape(Cout, KH * KW * Cpad).astype(jnp.bfloat16)

    g2 = params["gamma"].reshape(Cout, 1).astype(jnp.float32)
    beta2 = params["beta"].reshape(Cout, 1).astype(jnp.float32)
    # conv bias intentionally not passed: training-mode BatchNorm removes any
    # per-channel constant exactly (mean subtraction), so it is dead compute.

    kernel = functools.partial(upblock_kernel, N, Cpad, KH, KW, P, Ho, Wo)

    out_flat = pl.pallas_call(
        kernel,
        out_shape=jax.ShapeDtypeStruct((Cout, N * HoWo), jnp.float32),
        grid=(1,),
        in_specs=[
            pl.BlockSpec((N * Cpad, H * W), lambda i: (0, 0)),
            pl.BlockSpec((H * W, Lpad), lambda i: (0, 0)),
            pl.BlockSpec((Cout, KH * KW * Cpad), lambda i: (0, 0)),
            pl.BlockSpec((Cout, 1), lambda i: (0, 0)),
            pl.BlockSpec((Cout, 1), lambda i: (0, 0)),
        ],
        out_specs=pl.BlockSpec((Cout, N * HoWo), lambda i: (0, 0)),
        scratch_shapes=[pltpu.VMEM((KH * KW * Cpad, N * HoWo), jnp.float32)],
        compiler_params=pltpu.CompilerParams(
            dimension_semantics=("arbitrary",),
            vmem_limit_bytes=32 * 1024 * 1024,     # under v7x's 64 MiB physical VMEM
        ),
    )(xf, mup, wfold, g2, beta2)

    # (Cout, N*Ho*Wo) lane-dense kernel output -> NCHW
    return jnp.transpose(out_flat.reshape(Cout, N, Ho, Wo), (1, 0, 2, 3))


def upblock_reference(x, params, stride=2, padding=1):
    """Pure-JAX f32 reference (same semantics as the PyTorch module, training mode)."""
    a_h = _bilinear_matrix(x.shape[2], stride)
    a_w = _bilinear_matrix(x.shape[3], stride)
    up = jnp.einsum("oh,nchw,pw->ncop", a_h, x, a_w)
    y = jax.lax.conv_general_dilated(
        up, params["w"], window_strides=(1, 1),
        padding=((padding, padding), (padding, padding)),
        dimension_numbers=("NCHW", "OIHW", "NCHW"))
    y = y + params["b"][None, :, None, None]
    mean = jnp.mean(y, axis=(0, 2, 3), keepdims=True)
    var = jnp.mean((y - mean) ** 2, axis=(0, 2, 3), keepdims=True)   # biased
    yhat = (y - mean) * jax.lax.rsqrt(var + 1e-5)
    return jnp.maximum(yhat * params["gamma"][None, :, None, None]
                       + params["beta"][None, :, None, None], 0.0)


if __name__ == "__main__":
    key = jax.random.PRNGKey(0)
    kx, kp = jax.random.split(key)
    x = jax.random.normal(kx, (2, 4, 16, 16), jnp.float32)       # NCHW
    params = make_upblock_params(kp, in_channels=4, out_channels=8)

    out = jax.block_until_ready(upblock_forward(x, params))
    assert out.shape == (2, 8, 32, 32), out.shape
    assert bool(jnp.all(jnp.isfinite(out)))

    ref = upblock_reference(x, params)
    max_err = float(jnp.max(jnp.abs(out - ref)))
    assert max_err < 5e-2, f"max abs err vs f32 reference: {max_err}"
    print("KERNEL_OK")
</pallas_src>

<mosaic_0001>
module attributes {stable_mosaic.version = 11 : i64} {
  func.func @upblock_kernel(%arg0: i32, %arg1: memref<16x256xbf16, #tpu.memory_space<vmem>>, %arg2: memref<256x1152xbf16, #tpu.memory_space<vmem>>, %arg3: memref<8x72xbf16, #tpu.memory_space<vmem>>, %arg4: memref<8x1xf32, #tpu.memory_space<vmem>>, %arg5: memref<8x1xf32, #tpu.memory_space<vmem>>, %arg6: memref<8x2048xf32, #tpu.memory_space<vmem>>, %arg7: memref<72x2048xf32, #tpu.memory_space<vmem>>) attributes {dimension_semantics = [#tpu.dimension_semantics<arbitrary>], iteration_bounds = array<i64: 1>, scalar_prefetch = 0 : i64, scratch_operands = 1 : i64, tpu.core_type = #tpu.core_type<tc>, window_params = [{pipeline_mode = #tpu.pipeline_mode<synchronous>, transform_indices = @transform_0, window_bounds = array<i64: 16, 256>}, {pipeline_mode = #tpu.pipeline_mode<synchronous>, transform_indices = @transform_1, window_bounds = array<i64: 256, 1152>}, {pipeline_mode = #tpu.pipeline_mode<synchronous>, transform_indices = @transform_2, window_bounds = array<i64: 8, 72>}, {pipeline_mode = #tpu.pipeline_mode<synchronous>, transform_indices = @transform_3, window_bounds = array<i64: 8, 1>}, {pipeline_mode = #tpu.pipeline_mode<synchronous>, transform_indices = @transform_4, window_bounds = array<i64: 8, 1>}, {pipeline_mode = #tpu.pipeline_mode<synchronous>, transform_indices = @transform_5, window_bounds = array<i64: 8, 2048>}]} {
    %c0 = arith.constant 0 : index
    %c0_0 = arith.constant 0 : index
    %0 = vector.load %arg1[%c0, %c0_0] : memref<16x256xbf16, #tpu.memory_space<vmem>>, vector<16x256xbf16>
    %c0_1 = arith.constant 0 : index
    %c0_2 = arith.constant 0 : index
    %1 = vector.load %arg2[%c0_1, %c0_2] : memref<256x1152xbf16, #tpu.memory_space<vmem>>, vector<256x1152xbf16>
    %cst = arith.constant dense<0.000000e+00> : vector<16x1152xf32>
    %2 = tpu.matmul %0, %1, %cst {dimension_numbers = #tpu.dot_dimension_numbers<[1], [0], [0], [1], [0, 0, 1, 1], [], []>} : vector<16x256xbf16>, vector<256x1152xbf16>, vector<16x1152xf32> -> vector<16x1152xf32>
    %3 = tpu.iota {dimensions = array<i32: 1>} : vector<1x1024xi32>
    %c31_i32 = arith.constant 31 : i32
    %4 = vector.broadcast %c31_i32 : i32 to vector<1x1024xi32>
    %5 = arith.andi %3, %4 : vector<1x1024xi32>
    %6 = vector.extract_strided_slice %2 {offsets = [0, 0], sizes = [16, 1024], strides = [1, 1]} : vector<16x1152xf32> to vector<16x1024xf32>
    %c1_i32 = arith.constant 1 : i32
    %7 = vector.broadcast %c1_i32 : i32 to vector<1x1024xi32>
    %8 = arith.cmpi sge, %5, %7 : vector<1x1024xi32>
    %cst_3 = arith.constant 0.000000e+00 : f32
    %9 = vector.shape_cast %8 : vector<1x1024xi1> to vector<1x1024xi1>
    %10 = vector.broadcast %9 : vector<1x1024xi1> to vector<16x1024xi1>
    %11 = vector.broadcast %cst_3 : f32 to vector<16x1024xf32>
    %12 = arith.select %10, %6, %11 : vector<16x1024xi1>, vector<16x1024xf32>
    %13 = vector.extract_strided_slice %12 {offsets = [0, 0], sizes = [8, 1024], strides = [1, 1]} : vector<16x1024xf32> to vector<8x1024xf32>
    %c0_4 = arith.constant 0 : index
    %c0_5 = arith.constant 0 : index
    %14 = vector.load %arg7[%c0_4, %c0_5] : memref<72x2048xf32, #tpu.memory_space<vmem>>, vector<8x1024xf32>
    tpu.vector_store %arg7[%c0_4, %c0_5], %13 {strides = array<i32>} : memref<72x2048xf32, #tpu.memory_space<vmem>>, vector<8x1024xf32>,
    %15 = vector.extract_strided_slice %12 {offsets = [8, 0], sizes = [8, 1024], strides = [1, 1]} : vector<16x1024xf32> to vector<8x1024xf32>
    %c0_6 = arith.constant 0 : index
    %c1024 = arith.constant 1024 : index
    %16 = vector.load %arg7[%c0_6, %c1024] : memref<72x2048xf32, #tpu.memory_space<vmem>>, vector<8x1024xf32>
    tpu.vector_store %arg7[%c0_6, %c1024], %15 {strides = array<i32>} : memref<72x2048xf32, #tpu.memory_space<vmem>>, vector<8x1024xf32>,
    %17 = vector.extract_strided_slice %2 {offsets = [0, 1], sizes = [16, 1024], strides = [1, 1]} : vector<16x1152xf32> to vector<16x1024xf32>
    %18 = vector.extract_strided_slice %17 {offsets = [0, 0], sizes = [8, 1024], strides = [1, 1]} : vector<16x1024xf32> to vector<8x1024xf32>
    %c8 = arith.constant 8 : index
    %c0_7 = arith.constant 0 : index
    %19 = vector.load %arg7[%c8, %c0_7] : memref<72x2048xf32, #tpu.memory_space<vmem>>, vector<8x1024xf32>
    tpu.vector_store %arg7[%c8, %c0_7], %18 {strides = array<i32>} : memref<72x2048xf32, #tpu.memory_space<vmem>>, vector<8x1024xf32>,
    %20 = vector.extract_strided_slice %17 {offsets = [8, 0], sizes = [8, 1024], strides = [1, 1]} : vector<16x1024xf32> to vector<8x1024xf32>
    %c8_8 = arith.constant 8 : index
    %c1024_9 = arith.constant 1024 : index
    %21 = vector.load %arg7[%c8_8, %c1024_9] : memref<72x2048xf32, #tpu.memory_space<vmem>>, vector<8x1024xf32>
    tpu.vector_store %arg7[%c8_8, %c1024_9], %20 {strides = array<i32>} : memref<72x2048xf32, #tpu.memory_space<vmem>>, vector<8x1024xf32>,
    %22 = vector.extract_strided_slice %2 {offsets = [0, 2], sizes = [16, 1024], strides = [1, 1]} : vector<16x1152xf32> to vector<16x1024xf32>
    %c30_i32 = arith.constant 30 : i32
    %23 = vector.broadcast %c30_i32 : i32 to vector<1x1024xi32>
    %24 = arith.cmpi sle, %5, %23 : vector<1x1024xi32>
    %cst_10 = arith.constant 0.000000e+00 : f32
    %25 = vector.shape_cast %24 : vector<1x1024xi1> to vector<1x1024xi1>
    %26 = vector.broadcast %25 : vector<1x1024xi1> to vector<16x1024xi1>
    %27 = vector.broadcast %cst_10 : f32 to vector<16x1024xf32>
    %28 = arith.select %26, %22, %27 : vector<16x1024xi1>, vector<16x1024xf32>
    %29 = vector.extract_strided_slice %28 {offsets = [0, 0], sizes = [8, 1024], strides = [1, 1]} : vector<16x1024xf32> to vector<8x1024xf32>
    %c16 = arith.constant 16 : index
    %c0_11 = arith.constant 0 : index
    %30 = vector.load %arg7[%c16, %c0_11] : memref<72x2048xf32, #tpu.memory_space<vmem>>, vector<8x1024xf32>
    tpu.vector_store %arg7[%c16, %c0_11], %29 {strides = array<i32>} : memref<72x2048xf32, #tpu.memory_space<vmem>>, vector<8x1024xf32>,
    %31 = vector.extract_strided_slice %28 {offsets = [8, 0], sizes = [8, 1024], strides = [1, 1]} : vector<16x1024xf32> to vector<8x1024xf32>
    %c16_12 = arith.constant 16 : index
    %c1024_13 = arith.constant 1024 : index
    %32 = vector.load %arg7[%c16_12, %c1024_13] : memref<72x2048xf32, #tpu.memory_space<vmem>>, vector<8x1024xf32>
    tpu.vector_store %arg7[%c16_12, %c1024_13], %31 {strides = array<i32>} : memref<72x2048xf32, #tpu.memory_space<vmem>>, vector<8x1024xf32>,
    %33 = vector.extract_strided_slice %2 {offsets = [0, 32], sizes = [16, 1024], strides = [1, 1]} : vector<16x1152xf32> to vector<16x1024xf32>
    %c1_i32_14 = arith.constant 1 : i32
    %34 = vector.broadcast %c1_i32_14 : i32 to vector<1x1024xi32>
    %35 = arith.cmpi sge, %5, %34 : vector<1x1024xi32>
    %cst_15 = arith.constant 0.000000e+00 : f32
    %36 = vector.shape_cast %35 : vector<1x1024xi1> to vector<1x1024xi1>
    %37 = vector.broadcast %36 : vector<1x1024xi1> to vector<16x1024xi1>
    %38 = vector.broadcast %cst_15 : f32 to vector<16x1024xf32>
    %39 = arith.select %37, %33, %38 : vector<16x1024xi1>, vector<16x1024xf32>
    %40 = vector.extract_strided_slice %39 {offsets = [0, 0], sizes = [8, 1024], strides = [1, 1]} : vector<16x1024xf32> to vector<8x1024xf32>
    %c24 = arith.constant 24 : index
    %c0_16 = arith.constant 0 : index
    %41 = vector.load %arg7[%c24, %c0_16] : memref<72x2048xf32, #tpu.memory_space<vmem>>, vector<8x1024xf32>
    tpu.vector_store %arg7[%c24, %c0_16], %40 {strides = array<i32>} : memref<72x2048xf32, #tpu.memory_space<vmem>>, vector<8x1024xf32>,
    %42 = vector.extract_strided_slice %39 {offsets = [8, 0], sizes = [8, 1024], strides = [1, 1]} : vector<16x1024xf32> to vector<8x1024xf32>
    %c24_17 = arith.constant 24 : index
    %c1024_18 = arith.constant 1024 : index
    %43 = vector.load %arg7[%c24_17, %c1024_18] : memref<72x2048xf32, #tpu.memory_space<vmem>>, vector<8x1024xf32>
    tpu.vector_store %arg7[%c24_17, %c1024_18], %42 {strides = array<i32>} : memref<72x2048xf32, #tpu.memory_space<vmem>>, vector<8x1024xf32>,
    %44 = vector.extract_strided_slice %2 {offsets = [0, 33], sizes = [16, 1024], strides = [1, 1]} : vector<16x1152xf32> to vector<16x1024xf32>
    %45 = vector.extract_strided_slice %44 {offsets = [0, 0], sizes = [8, 1024], strides = [1, 1]} : vector<16x1024xf32> to vector<8x1024xf32>
    %c32 = arith.constant 32 : index
    %c0_19 = arith.constant 0 : index
    %46 = vector.load %arg7[%c32, %c0_19] : memref<72x2048xf32, #tpu.memory_space<vmem>>, vector<8x1024xf32>
    tpu.vector_store %arg7[%c32, %c0_19], %45 {strides = array<i32>} : memref<72x2048xf32, #tpu.memory_space<vmem>>, vector<8x1024xf32>,
    %47 = vector.extract_strided_slice %44 {offsets = [8, 0], sizes = [8, 1024], strides = [1, 1]} : vector<16x1024xf32> to vector<8x1024xf32>
    %c32_20 = arith.constant 32 : index
    %c1024_21 = arith.constant 1024 : index
    %48 = vector.load %arg7[%c32_20, %c1024_21] : memref<72x2048xf32, #tpu.memory_space<vmem>>, vector<8x1024xf32>
    tpu.vector_store %arg7[%c32_20, %c1024_21], %47 {strides = array<i32>} : memref<72x2048xf32, #tpu.memory_space<vmem>>, vector<8x1024xf32>,
    %49 = vector.extract_strided_slice %2 {offsets = [0, 34], sizes = [16, 1024], strides = [1, 1]} : vector<16x1152xf32> to vector<16x1024xf32>
    %c30_i32_22 = arith.constant 30 : i32
    %50 = vector.broadcast %c30_i32_22 : i32 to vector<1x1024xi32>
    %51 = arith.cmpi sle, %5, %50 : vector<1x1024xi32>
    %cst_23 = arith.constant 0.000000e+00 : f32
    %52 = vector.shape_cast %51 : vector<1x1024xi1> to vector<1x1024xi1>
    %53 = vector.broadcast %52 : vector<1x1024xi1> to vector<16x1024xi1>
    %54 = vector.broadcast %cst_23 : f32 to vector<16x1024xf32>
    %55 = arith.select %53, %49, %54 : vector<16x1024xi1>, vector<16x1024xf32>
    %56 = vector.extract_strided_slice %55 {offsets = [0, 0], sizes = [8, 1024], strides = [1, 1]} : vector<16x1024xf32> to vector<8x1024xf32>
    %c40 = arith.constant 40 : index
    %c0_24 = arith.constant 0 : index
    %57 = vector.load %arg7[%c40, %c0_24] : memref<72x2048xf32, #tpu.memory_space<vmem>>, vector<8x1024xf32>
    tpu.vector_store %arg7[%c40, %c0_24], %56 {strides = array<i32>} : memref<72x2048xf32, #tpu.memory_space<vmem>>, vector<8x1024xf32>,
    %58 = vector.extract_strided_slice %55 {offsets = [8, 0], sizes = [8, 1024], strides = [1, 1]} : vector<16x1024xf32> to vector<8x1024xf32>
    %c40_25 = arith.constant 40 : index
    %c1024_26 = arith.constant 1024 : index
    %59 = vector.load %arg7[%c40_25, %c1024_26] : memref<72x2048xf32, #tpu.memory_space<vmem>>, vector<8x1024xf32>
    tpu.vector_store %arg7[%c40_25, %c1024_26], %58 {strides = array<i32>} : memref<72x2048xf32, #tpu.memory_space<vmem>>, vector<8x1024xf32>,
    %60 = vector.extract_strided_slice %2 {offsets = [0, 64], sizes = [16, 1024], strides = [1, 1]} : vector<16x1152xf32> to vector<16x1024xf32>
    %c1_i32_27 = arith.constant 1 : i32
    %61 = vector.broadcast %c1_i32_27 : i32 to vector<1x1024xi32>
    %62 = arith.cmpi sge, %5, %61 : vector<1x1024xi32>
    %cst_28 = arith.constant 0.000000e+00 : f32
    %63 = vector.shape_cast %62 : vector<1x1024xi1> to vector<1x1024xi1>
    %64 = vector.broadcast %63 : vector<1x1024xi1> to vector<16x1024xi1>
    %65 = vector.broadcast %cst_28 : f32 to vector<16x1024xf32>
    %66 = arith.select %64, %60, %65 : vector<16x1024xi1>, vector<16x1024xf32>
    %67 = vector.extract_strided_slice %66 {offsets = [0, 0], sizes = [8, 1024], strides = [1, 1]} : vector<16x1024xf32> to vector<8x1024xf32>
    %c48 = arith.constant 48 : index
    %c0_29 = arith.constant 0 : index
    %68 = vector.load %arg7[%c48, %c0_29] : memref<72x2048xf32, #tpu.memory_space<vmem>>, vector<8x1024xf32>
    tpu.vector_store %arg7[%c48, %c0_29], %67 {strides = array<i32>} : memref<72x2048xf32, #tpu.memory_space<vmem>>, vector<8x1024xf32>,
    %69 = vector.extract_strided_slice %66 {offsets = [8, 0], sizes = [8, 1024], strides = [1, 1]} : vector<16x1024xf32> to vector<8x1024xf32>
    %c48_30 = arith.constant 48 : index
    %c1024_31 = arith.constant 1024 : index
    %70 = vector.load %arg7[%c48_30, %c1024_31] : memref<72x2048xf32, #tpu.memory_space<vmem>>, vector<8x1024xf32>
    tpu.vector_store %arg7[%c48_30, %c1024_31], %69 {strides = array<i32>} : memref<72x2048xf32, #tpu.memory_space<vmem>>, vector<8x1024xf32>,
    %71 = vector.extract_strided_slice %2 {offsets = [0, 65], sizes = [16, 1024], strides = [1, 1]} : vector<16x1152xf32> to vector<16x1024xf32>
    %72 = vector.extract_strided_slice %71 {offsets = [0, 0], sizes = [8, 1024], strides = [1, 1]} : vector<16x1024xf32> to vector<8x1024xf32>
    %c56 = arith.constant 56 : index
    %c0_32 = arith.constant 0 : index
    %73 = vector.load %arg7[%c56, %c0_32] : memref<72x2048xf32, #tpu.memory_space<vmem>>, vector<8x1024xf32>
    tpu.vector_store %arg7[%c56, %c0_32], %72 {strides = array<i32>} : memref<72x2048xf32, #tpu.memory_space<vmem>>, vector<8x1024xf32>,
    %74 = vector.extract_strided_slice %71 {offsets = [8, 0], sizes = [8, 1024], strides = [1, 1]} : vector<16x1024xf32> to vector<8x1024xf32>
    %c56_33 = arith.constant 56 : index
    %c1024_34 = arith.constant 1024 : index
    %75 = vector.load %arg7[%c56_33, %c1024_34] : memref<72x2048xf32, #tpu.memory_space<vmem>>, vector<8x1024xf32>
    tpu.vector_store %arg7[%c56_33, %c1024_34], %74 {strides = array<i32>} : memref<72x2048xf32, #tpu.memory_space<vmem>>, vector<8x1024xf32>,
    %76 = vector.extract_strided_slice %2 {offsets = [0, 66], sizes = [16, 1024], strides = [1, 1]} : vector<16x1152xf32> to vector<16x1024xf32>
    %c30_i32_35 = arith.constant 30 : i32
    %77 = vector.broadcast %c30_i32_35 : i32 to vector<1x1024xi32>
    %78 = arith.cmpi sle, %5, %77 : vector<1x1024xi32>
    %cst_36 = arith.constant 0.000000e+00 : f32
    %79 = vector.shape_cast %78 : vector<1x1024xi1> to vector<1x1024xi1>
    %80 = vector.broadcast %79 : vector<1x1024xi1> to vector<16x1024xi1>
    %81 = vector.broadcast %cst_36 : f32 to vector<16x1024xf32>
    %82 = arith.select %80, %76, %81 : vector<16x1024xi1>, vector<16x1024xf32>
    %83 = vector.extract_strided_slice %82 {offsets = [0, 0], sizes = [8, 1024], strides = [1, 1]} : vector<16x1024xf32> to vector<8x1024xf32>
    %c64 = arith.constant 64 : index
    %c0_37 = arith.constant 0 : index
    %84 = vector.load %arg7[%c64, %c0_37] : memref<72x2048xf32, #tpu.memory_space<vmem>>, vector<8x1024xf32>
    tpu.vector_store %arg7[%c64, %c0_37], %83 {strides = array<i32>} : memref<72x2048xf32, #tpu.memory_space<vmem>>, vector<8x1024xf32>,
    %85 = vector.extract_strided_slice %82 {offsets = [8, 0], sizes = [8, 1024], strides = [1, 1]} : vector<16x1024xf32> to vector<8x1024xf32>
    %c64_38 = arith.constant 64 : index
    %c1024_39 = arith.constant 1024 : index
    %86 = vector.load %arg7[%c64_38, %c1024_39] : memref<72x2048xf32, #tpu.memory_space<vmem>>, vector<8x1024xf32>
    tpu.vector_store %arg7[%c64_38, %c1024_39], %85 {strides = array<i32>} : memref<72x2048xf32, #tpu.memory_space<vmem>>, vector<8x1024xf32>,
    %c0_40 = arith.constant 0 : index
    %c0_41 = arith.constant 0 : index
    %87 = vector.load %arg3[%c0_40, %c0_41] : memref<8x72xbf16, #tpu.memory_space<vmem>>, vector<8x72xbf16>
    %c0_42 = arith.constant 0 : index
    %c0_43 = arith.constant 0 : index
    %88 = vector.load %arg7[%c0_42, %c0_43] : memref<72x2048xf32, #tpu.memory_space<vmem>>, vector<72x2048xf32>
    %89 = arith.truncf %88 : vector<72x2048xf32> to vector<72x2048xbf16>
    %cst_44 = arith.constant dense<0.000000e+00> : vector<8x2048xf32>
    %90 = tpu.matmul %87, %89, %cst_44 {dimension_numbers = #tpu.dot_dimension_numbers<[1], [0], [0], [1], [0, 0, 1, 1], [], []>} : vector<8x72xbf16>, vector<72x2048xbf16>, vector<8x2048xf32> -> vector<8x2048xf32>
    %cst_45 = arith.constant dense<0.000000e+00> : vector<8xf32>
    %91 = vector.multi_reduction <add>, %90, %cst_45 [1] : vector<8x2048xf32> to vector<8xf32>
    %92 = vector.shape_cast %91 : vector<8xf32> to vector<8x1xf32>
    %cst_46 = arith.constant 4.8828125E-4 : f32
    %93 = vector.broadcast %cst_46 : f32 to vector<8x1xf32>
    %94 = arith.mulf %92, %93 : vector<8x1xf32>
    %95 = arith.mulf %90, %90 : vector<8x2048xf32>
    %cst_47 = arith.constant dense<0.000000e+00> : vector<8xf32>
    %96 = vector.multi_reduction <add>, %95, %cst_47 [1] : vector<8x2048xf32> to vector<8xf32>
    %97 = vector.shape_cast %96 : vector<8xf32> to vector<8x1xf32>
    %cst_48 = arith.constant 4.8828125E-4 : f32
    %98 = vector.broadcast %cst_48 : f32 to vector<8x1xf32>
    %99 = arith.mulf %97, %98 : vector<8x1xf32>
    %100 = arith.mulf %94, %94 : vector<8x1xf32>
    %101 = arith.subf %99, %100 : vector<8x1xf32>
    %c0_49 = arith.constant 0 : index
    %c0_50 = arith.constant 0 : index
    %102 = vector.load %arg4[%c0_49, %c0_50] : memref<8x1xf32, #tpu.memory_space<vmem>>, vector<8x1xf32>
    %cst_51 = arith.constant 9.99999974E-6 : f32
    %103 = vector.broadcast %cst_51 : f32 to vector<8x1xf32>
    %104 = arith.addf %101, %103 : vector<8x1xf32>
    %105 = math.rsqrt %104 : vector<8x1xf32>
    %106 = arith.mulf %102, %105 : vector<8x1xf32>
    %c0_52 = arith.constant 0 : index
    %c0_53 = arith.constant 0 : index
    %107 = vector.load %arg5[%c0_52, %c0_53] : memref<8x1xf32, #tpu.memory_space<vmem>>, vector<8x1xf32>
    %108 = arith.mulf %94, %106 : vector<8x1xf32>
    %109 = arith.subf %107, %108 : vector<8x1xf32>
    %110 = vector.broadcast %106 : vector<8x1xf32> to vector<8x2048xf32>
    %111 = arith.mulf %90, %110 : vector<8x2048xf32>
    %112 = vector.broadcast %109 : vector<8x1xf32> to vector<8x2048xf32>
    %113 = arith.addf %111, %112 : vector<8x2048xf32>
    %cst_54 = arith.constant 0.000000e+00 : f32
    %114 = vector.broadcast %cst_54 : f32 to vector<8x2048xf32>
    %115 = arith.maximumf %113, %114 : vector<8x2048xf32>
    %c0_55 = arith.constant 0 : index
    %c0_56 = arith.constant 0 : index
    %116 = vector.load %arg6[%c0_55, %c0_56] : memref<8x2048xf32, #tpu.memory_space<vmem>>, vector<8x2048xf32>
    tpu.vector_store %arg6[%c0_55, %c0_56], %115 {strides = array<i32>} : memref<8x2048xf32, #tpu.memory_space<vmem>>, vector<8x2048xf32>,
    return
  }
  func.func @transform_0(%arg0: i32) -> (i32, i32) {
    %c0_i32 = arith.constant 0 : i32
    %c0_i32_0 = arith.constant 0 : i32
    %c0_i32_1 = arith.constant 0 : i32
    return %c0_i32, %c0_i32_0 : i32, i32
  }
  func.func @transform_1(%arg0: i32) -> (i32, i32) {
    %c0_i32 = arith.constant 0 : i32
    %c0_i32_0 = arith.constant 0 : i32
    %c0_i32_1 = arith.constant 0 : i32
    return %c0_i32, %c0_i32_0 : i32, i32
  }
  func.func @transform_2(%arg0: i32) -> (i32, i32) {
    %c0_i32 = arith.constant 0 : i32
    %c0_i32_0 = arith.constant 0 : i32
    %c0_i32_1 = arith.constant 0 : i32
    return %c0_i32, %c0_i32_0 : i32, i32
  }
  func.func @transform_3(%arg0: i32) -> (i32, i32) {
    %c0_i32 = arith.constant 0 : i32
    %c0_i32_0 = arith.constant 0 : i32
    %c0_i32_1 = arith.constant 0 : i32
    return %c0_i32, %c0_i32_0 : i32, i32
  }
  func.func @transform_4(%arg0: i32) -> (i32, i32) {
    %c0_i32 = arith.constant 0 : i32
    %c0_i32_0 = arith.constant 0 : i32
    %c0_i32_1 = arith.constant 0 : i32
    return %c0_i32, %c0_i32_0 : i32, i32
  }
  func.func @transform_5(%arg0: i32) -> (i32, i32) {
    %c0_i32 = arith.constant 0 : i32
    %c0_i32_0 = arith.constant 0 : i32
    %c0_i32_1 = arith.constant 0 : i32
    return %c0_i32, %c0_i32_0 : i32, i32
  }
}

</mosaic_0001>

<llo_original>
// kernel: upblock_forward.1
$region0: #{upblock_forward.1}
  #allocation0 [shape = 'u32[]', space=smem, size = 0x4, offset = 0x4, fixed_abs, tag = 'smem constant byte address 0x4 - core index']
  #allocation1 [shape = 'u32[144,128]{1,0:T(1,128)}', space=vmem, size = 0x12000, scoped, tag = 'internal scratch']
  #allocation2 [shape = 'f32[72,2048]{1,0:T(8,128)}', space=vmem, size = 0x90000, scoped, tag = 'scratch operand']
  %s0 = inlined_call_operand.vmem [shape: bf16[16,256], index: 0, kind: input, shape index: {}]
  %s1 = inlined_call_operand.vmem [shape: bf16[256,1152], index: 1, kind: input, shape index: {}]
  %s2 = inlined_call_operand.vmem [shape: bf16[8,72], index: 2, kind: input, shape index: {}]
  %s3 = inlined_call_operand.vmem [shape: f32[8,1], index: 3, kind: input, shape index: {}]
  %s4 = inlined_call_operand.vmem [shape: f32[8,1], index: 4, kind: input, shape index: {}]
  %s5 = inlined_call_operand.vmem [shape: f32[8,2048], index: 5, kind: output, shape index: {}]
  %s6 = sld [smem:[#allocation0]]
  $region30: #{upblock_forward.1} parent=0
    _
  %s8 = ssub.s32 1, %s6
  %s9 = scalar_select 0, %s8, %s6
  // Predicated region
  $region2: #{upblock_forward.1} parent=0 // pred_check
    _
  $region3: #{upblock_forward.1} parent=0 // pred_check_branch
    %11 = sbr.rel (0) target = $region5
  $region4: #{upblock_forward.1} parent=0 // pred_region
    _
  $region5: #{upblock_forward.1} parent=0 // pred_fallthru
    _
  // Predicated region
  $region6: #{upblock_forward.1} parent=0 // pred_check
    _
  $region7: #{upblock_forward.1} parent=0 // pred_check_branch
    %13 = sbr.rel (0) target = $region9
  $region8: #{upblock_forward.1} parent=0 // pred_region
    _
  $region9: #{upblock_forward.1} parent=0 // pred_fallthru
    _
  // Predicated region
  $region10: #{upblock_forward.1} parent=0 // pred_check
    _
  $region11: #{upblock_forward.1} parent=0 // pred_check_branch
    %15 = sbr.rel (0) target = $region13
  $region12: #{upblock_forward.1} parent=0 // pred_region
    _
  $region13: #{upblock_forward.1} parent=0 // pred_fallthru
    _
  // Predicated region
  $region14: #{upblock_forward.1} parent=0 // pred_check
    _
  $region15: #{upblock_forward.1} parent=0 // pred_check_branch
    %17 = sbr.rel (0) target = $region17
  $region16: #{upblock_forward.1} parent=0 // pred_region
    _
  $region17: #{upblock_forward.1} parent=0 // pred_fallthru
    _
  // Predicated region
  $region18: #{upblock_forward.1} parent=0 // pred_check
    _
  $region19: #{upblock_forward.1} parent=0 // pred_check_branch
    %19 = sbr.rel (0) target = $region21
  $region20: #{upblock_forward.1} parent=0 // pred_region
    _
  $region21: #{upblock_forward.1} parent=0 // pred_fallthru
    _
  %v21 = vld [vmem:[%s0] sm:$0xff]
  %v22 = vld [vmem:[%s0 + $0x8] sm:$0xff]
  %v23 = vld [vmem:[%s1] sm:$0xff]
  %v24 = vld [vmem:[%s1 + $0x8] sm:$0xff]
  %v25 = vld [vmem:[%s1 + $0x10] sm:$0xff]
  %v26 = vld [vmem:[%s1 + $0x18] sm:$0xff]
  %v27 = vld [vmem:[%s1 + $0x20] sm:$0xf]
  %v28 = vld [vmem:[%s1 + $0x24] sm:$0xff]
  %v29 = vld [vmem:[%s1 + $0x2c] sm:$0xff]
  %v30 = vld [vmem:[%s1 + $0x34] sm:$0xff]
  %v31 = vld [vmem:[%s1 + $0x3c] sm:$0xff]
  %v32 = vld [vmem:[%s1 + $0x44] sm:$0xf]
  %v33 = vld [vmem:[%s1 + $0x48] sm:$0xff]
  %v34 = vld [vmem:[%s1 + $0x50] sm:$0xff]
  %v35 = vld [vmem:[%s1 + $0x58] sm:$0xff]
  %v36 = vld [vmem:[%s1 + $0x60] sm:$0xff]
  %v37 = vld [vmem:[%s1 + $0x68] sm:$0xf]
  %v38 = vld [vmem:[%s1 + $0x6c] sm:$0xff]
  %v39 = vld [vmem:[%s1 + $0x74] sm:$0xff]
  %v40 = vld [vmem:[%s1 + $0x7c] sm:$0xff]
  %v41 = vld [vmem:[%s1 + $0x84] sm:$0xff]
  %v42 = vld [vmem:[%s1 + $0x8c] sm:$0xf]
  %v43 = vld [vmem:[%s1 + $0x90] sm:$0xff]
  %v44 = vld [vmem:[%s1 + $0x98] sm:$0xff]
  %v45 = vld [vmem:[%s1 + $0xa0] sm:$0xff]
  %v46 = vld [vmem:[%s1 + $0xa8] sm:$0xff]
  %v47 = vld [vmem:[%s1 + $0xb0] sm:$0xf]
  %v48 = vld [vmem:[%s1 + $0xb4] sm:$0xff]
  %v49 = vld [vmem:[%s1 + $0xbc] sm:$0xff]
  %v50 = vld [vmem:[%s1 + $0xc4] sm:$0xff]
  %v51 = vld [vmem:[%s1 + $0xcc] sm:$0xff]
  %v52 = vld [vmem:[%s1 + $0xd4] sm:$0xf]
  %v53 = vld [vmem:[%s1 + $0xd8] sm:$0xff]
  %v54 = vld [vmem:[%s1 + $0xe0] sm:$0xff]
  %v55 = vld [vmem:[%s1 + $0xe8] sm:$0xff]
  %v56 = vld [vmem:[%s1 + $0xf0] sm:$0xff]
  %v57 = vld [vmem:[%s1 + $0xf8] sm:$0xf]
  %v58 = vld [vmem:[%s1 + $0xfc] sm:$0xff]
  %v59 = vld [vmem:[%s1 + $0x104] sm:$0xff]
  %v60 = vld [vmem:[%s1 + $0x10c] sm:$0xff]
  %v61 = vld [vmem:[%s1 + $0x114] sm:$0xff]
  %v62 = vld [vmem:[%s1 + $0x11c] sm:$0xf]
  %v63 = vld [vmem:[%s1 + $0x120] sm:$0xff]
  %v64 = vld [vmem:[%s1 + $0x128] sm:$0xff]
  %v65 = vld [vmem:[%s1 + $0x130] sm:$0xff]
  %v66 = vld [vmem:[%s1 + $0x138] sm:$0xff]
  %v67 = vld [vmem:[%s1 + $0x140] sm:$0xf]
  %v68 = vld [vmem:[%s1 + $0x144] sm:$0xff]
  %v69 = vld [vmem:[%s1 + $0x14c] sm:$0xff]
  %v70 = vld [vmem:[%s1 + $0x154] sm:$0xff]
  %v71 = vld [vmem:[%s1 + $0x15c] sm:$0xff]
  %v72 = vld [vmem:[%s1 + $0x164] sm:$0xf]
  %v73 = vld [vmem:[%s1 + $0x168] sm:$0xff]
  %v74 = vld [vmem:[%s1 + $0x170] sm:$0xff]
  %v75 = vld [vmem:[%s1 + $0x178] sm:$0xff]
  %v76 = vld [vmem:[%s1 + $0x180] sm:$0xff]
  %v77 = vld [vmem:[%s1 + $0x188] sm:$0xf]
  %v78 = vld [vmem:[%s1 + $0x18c] sm:$0xff]
  %v79 = vld [vmem:[%s1 + $0x194] sm:$0xff]
  %v80 = vld [vmem:[%s1 + $0x19c] sm:$0xff]
  %v81 = vld [vmem:[%s1 + $0x1a4] sm:$0xff]
  %v82 = vld [vmem:[%s1 + $0x1ac] sm:$0xf]
  %v83 = vld [vmem:[%s1 + $0x1b0] sm:$0xff]
  %v84 = vld [vmem:[%s1 + $0x1b8] sm:$0xff]
  %v85 = vld [vmem:[%s1 + $0x1c0] sm:$0xff]
  %v86 = vld [vmem:[%s1 + $0x1c8] sm:$0xff]
  %v87 = vld [vmem:[%s1 + $0x1d0] sm:$0xf]
  %v88 = vld [vmem:[%s1 + $0x1d4] sm:$0xff]
  %v89 = vld [vmem:[%s1 + $0x1dc] sm:$0xff]
  %v90 = vld [vmem:[%s1 + $0x1e4] sm:$0xff]
  %v91 = vld [vmem:[%s1 + $0x1ec] sm:$0xff]
  %v92 = vld [vmem:[%s1 + $0x1f4] sm:$0xf]
  %v93 = vld [vmem:[%s1 + $0x1f8] sm:$0xff]
  %v94 = vld [vmem:[%s1 + $0x200] sm:$0xff]
  %v95 = vld [vmem:[%s1 + $0x208] sm:$0xff]
  %v96 = vld [vmem:[%s1 + $0x210] sm:$0xff]
  %v97 = vld [vmem:[%s1 + $0x218] sm:$0xf]
  %v98 = vld [vmem:[%s1 + $0x21c] sm:$0xff]
  %v99 = vld [vmem:[%s1 + $0x224] sm:$0xff]
  %v100 = vld [vmem:[%s1 + $0x22c] sm:$0xff]
  %v101 = vld [vmem:[%s1 + $0x234] sm:$0xff]
  %v102 = vld [vmem:[%s1 + $0x23c] sm:$0xf]
  %v103 = vld [vmem:[%s1 + $0x240] sm:$0xff]
  %v104 = vld [vmem:[%s1 + $0x248] sm:$0xff]
  %v105 = vld [vmem:[%s1 + $0x250] sm:$0xff]
  %v106 = vld [vmem:[%s1 + $0x258] sm:$0xff]
  %v107 = vld [vmem:[%s1 + $0x260] sm:$0xf]
  %v108 = vld [vmem:[%s1 + $0x264] sm:$0xff]
  %v109 = vld [vmem:[%s1 + $0x26c] sm:$0xff]
  %v110 = vld [vmem:[%s1 + $0x274] sm:$0xff]
  %v111 = vld [vmem:[%s1 + $0x27c] sm:$0xff]
  %v112 = vld [vmem:[%s1 + $0x284] sm:$0xf]
  %v113 = vld [vmem:[%s1 + $0x288] sm:$0xff]
  %v114 = vld [vmem:[%s1 + $0x290] sm:$0xff]
  %v115 = vld [vmem:[%s1 + $0x298] sm:$0xff]
  %v116 = vld [vmem:[%s1 + $0x2a0] sm:$0xff]
  %v117 = vld [vmem:[%s1 + $0x2a8] sm:$0xf]
  %v118 = vld [vmem:[%s1 + $0x2ac] sm:$0xff]
  %v119 = vld [vmem:[%s1 + $0x2b4] sm:$0xff]
  %v120 = vld [vmem:[%s1 + $0x2bc] sm:$0xff]
  %v121 = vld [vmem:[%s1 + $0x2c4] sm:$0xff]
  %v122 = vld [vmem:[%s1 + $0x2cc] sm:$0xf]
  %v123 = vld [vmem:[%s1 + $0x2d0] sm:$0xff]
  %v124 = vld [vmem:[%s1 + $0x2d8] sm:$0xff]
  %v125 = vld [vmem:[%s1 + $0x2e0] sm:$0xff]
  %v126 = vld [vmem:[%s1 + $0x2e8] sm:$0xff]
  %v127 = vld [vmem:[%s1 + $0x2f0] sm:$0xf]
  %v128 = vld [vmem:[%s1 + $0x2f4] sm:$0xff]
  %v129 = vld [vmem:[%s1 + $0x2fc] sm:$0xff]
  %v130 = vld [vmem:[%s1 + $0x304] sm:$0xff]
  %v131 = vld [vmem:[%s1 + $0x30c] sm:$0xff]
  %v132 = vld [vmem:[%s1 + $0x314] sm:$0xf]
  %v133 = vld [vmem:[%s1 + $0x318] sm:$0xff]
  %v134 = vld [vmem:[%s1 + $0x320] sm:$0xff]
  %v135 = vld [vmem:[%s1 + $0x328] sm:$0xff]
  %v136 = vld [vmem:[%s1 + $0x330] sm:$0xff]
  %v137 = vld [vmem:[%s1 + $0x338] sm:$0xf]
  %v138 = vld [vmem:[%s1 + $0x33c] sm:$0xff]
  %v139 = vld [vmem:[%s1 + $0x344] sm:$0xff]
  %v140 = vld [vmem:[%s1 + $0x34c] sm:$0xff]
  %v141 = vld [vmem:[%s1 + $0x354] sm:$0xff]
  %v142 = vld [vmem:[%s1 + $0x35c] sm:$0xf]
  %v143 = vld [vmem:[%s1 + $0x360] sm:$0xff]
  %v144 = vld [vmem:[%s1 + $0x368] sm:$0xff]
  %v145 = vld [vmem:[%s1 + $0x370] sm:$0xff]
  %v146 = vld [vmem:[%s1 + $0x378] sm:$0xff]
  %v147 = vld [vmem:[%s1 + $0x380] sm:$0xf]
  %v148 = vld [vmem:[%s1 + $0x384] sm:$0xff]
  %v149 = vld [vmem:[%s1 + $0x38c] sm:$0xff]
  %v150 = vld [vmem:[%s1 + $0x394] sm:$0xff]
  %v151 = vld [vmem:[%s1 + $0x39c] sm:$0xff]
  %v152 = vld [vmem:[%s1 + $0x3a4] sm:$0xf]
  %v153 = vld [vmem:[%s1 + $0x3a8] sm:$0xff]
  %v154 = vld [vmem:[%s1 + $0x3b0] sm:$0xff]
  %v155 = vld [vmem:[%s1 + $0x3b8] sm:$0xff]
  %v156 = vld [vmem:[%s1 + $0x3c0] sm:$0xff]
  %v157 = vld [vmem:[%s1 + $0x3c8] sm:$0xf]
  %v158 = vld [vmem:[%s1 + $0x3cc] sm:$0xff]
  %v159 = vld [vmem:[%s1 + $0x3d4] sm:$0xff]
  %v160 = vld [vmem:[%s1 + $0x3dc] sm:$0xff]
  %v161 = vld [vmem:[%s1 + $0x3e4] sm:$0xff]
  %v162 = vld [vmem:[%s1 + $0x3ec] sm:$0xf]
  %v163 = vld [vmem:[%s1 + $0x3f0] sm:$0xff]
  %v164 = vld [vmem:[%s1 + $0x3f8] sm:$0xff]
  %v165 = vld [vmem:[%s1 + $0x400] sm:$0xff]
  %v166 = vld [vmem:[%s1 + $0x408] sm:$0xff]
  %v167 = vld [vmem:[%s1 + $0x410] sm:$0xf]
  %v168 = vld [vmem:[%s1 + $0x414] sm:$0xff]
  %v169 = vld [vmem:[%s1 + $0x41c] sm:$0xff]
  %v170 = vld [vmem:[%s1 + $0x424] sm:$0xff]
  %v171 = vld [vmem:[%s1 + $0x42c] sm:$0xff]
  %v172 = vld [vmem:[%s1 + $0x434] sm:$0xf]
  %v173 = vld [vmem:[%s1 + $0x438] sm:$0xff]
  %v174 = vld [vmem:[%s1 + $0x440] sm:$0xff]
  %v175 = vld [vmem:[%s1 + $0x448] sm:$0xff]
  %v176 = vld [vmem:[%s1 + $0x450] sm:$0xff]
  %v177 = vld [vmem:[%s1 + $0x458] sm:$0xf]
  %v178 = vld [vmem:[%s1 + $0x45c] sm:$0xff]
  %v179 = vld [vmem:[%s1 + $0x464] sm:$0xff]
  %v180 = vld [vmem:[%s1 + $0x46c] sm:$0xff]
  %v181 = vld [vmem:[%s1 + $0x474] sm:$0xff]
  %v182 = vld [vmem:[%s1 + $0x47c] sm:$0xf]
  %v185 = vunpack.c.l.b16 %v21
  %v186 = vunpack.c.h.b16 %v21
  %v187 = vunpack.c.l.b16 %v22
  %v188 = vunpack.c.h.b16 %v22
  %v189 = vpack.c.b16 %v187, %v185
  %v190 = vpack.c.b16 %v188, %v186
  %v353 = vunpack.c.l.b16 %v23
  %v354 = vunpack.c.h.b16 %v23
  %v355 = vunpack.c.l.b16 %v24
  %v356 = vunpack.c.h.b16 %v24
  %v357 = vunpack.c.l.b16 %v25
  %v358 = vunpack.c.h.b16 %v25
  %v359 = vunpack.c.l.b16 %v26
  %v360 = vunpack.c.h.b16 %v26
  %v361 = vunpack.c.l.b16 %v27
  %v362 = vunpack.c.l.b16 %v28
  %v363 = vunpack.c.h.b16 %v28
  %v364 = vunpack.c.l.b16 %v29
  %v365 = vunpack.c.h.b16 %v29
  %v366 = vunpack.c.l.b16 %v30
  %v367 = vunpack.c.h.b16 %v30
  %v368 = vunpack.c.l.b16 %v31
  %v369 = vunpack.c.h.b16 %v31
  %v370 = vunpack.c.l.b16 %v32
  %v371 = vunpack.c.l.b16 %v33
  %v372 = vunpack.c.h.b16 %v33
  %v373 = vunpack.c.l.b16 %v34
  %v374 = vunpack.c.h.b16 %v34
  %v375 = vunpack.c.l.b16 %v35
  %v376 = vunpack.c.h.b16 %v35
  %v377 = vunpack.c.l.b16 %v36
  %v378 = vunpack.c.h.b16 %v36
  %v379 = vunpack.c.l.b16 %v37
  %v380 = vunpack.c.l.b16 %v38
  %v381 = vunpack.c.h.b16 %v38
  %v382 = vunpack.c.l.b16 %v39
  %v383 = vunpack.c.h.b16 %v39
  %v384 = vunpack.c.l.b16 %v40
  %v385 = vunpack.c.h.b16 %v40
  %v386 = vunpack.c.l.b16 %v41
  %v387 = vunpack.c.h.b16 %v41
  %v388 = vunpack.c.l.b16 %v42
  %v389 = vunpack.c.l.b16 %v43
  %v390 = vunpack.c.h.b16 %v43
  %v391 = vunpack.c.l.b16 %v44
  %v392 = vunpack.c.h.b16 %v44
  %v393 = vunpack.c.l.b16 %v45
  %v394 = vunpack.c.h.b16 %v45
  %v395 = vunpack.c.l.b16 %v46
  %v396 = vunpack.c.h.b16 %v46
  %v397 = vunpack.c.l.b16 %v47
  %v398 = vunpack.c.l.b16 %v48
  %v399 = vunpack.c.h.b16 %v48
  %v400 = vunpack.c.l.b16 %v49
  %v401 = vunpack.c.h.b16 %v49
  %v402 = vunpack.c.l.b16 %v50
  %v403 = vunpack.c.h.b16 %v50
  %v404 = vunpack.c.l.b16 %v51
  %v405 = vunpack.c.h.b16 %v51
  %v406 = vunpack.c.l.b16 %v52
  %v407 = vunpack.c.l.b16 %v53
  %v408 = vunpack.c.h.b16 %v53
  %v409 = vunpack.c.l.b16 %v54
  %v410 = vunpack.c.h.b16 %v54
  %v411 = vunpack.c.l.b16 %v55
  %v412 = vunpack.c.h.b16 %v55
  %v413 = vunpack.c.l.b16 %v56
  %v414 = vunpack.c.h.b16 %v56
  %v415 = vunpack.c.l.b16 %v57
  %v416 = vunpack.c.l.b16 %v58
  %v417 = vunpack.c.h.b16 %v58
  %v418 = vunpack.c.l.b16 %v59
  %v419 = vunpack.c.h.b16 %v59
  %v420 = vunpack.c.l.b16 %v60
  %v421 = vunpack.c.h.b16 %v60
  %v422 = vunpack.c.l.b16 %v61
  %v423 = vunpack.c.h.b16 %v61
  %v424 = vunpack.c.l.b16 %v62
  %v425 = vunpack.c.l.b16 %v63
  %v426 = vunpack.c.h.b16 %v63
  %v427 = vunpack.c.l.b16 %v64
  %v428 = vunpack.c.h.b16 %v64
  %v429 = vunpack.c.l.b16 %v65
  %v430 = vunpack.c.h.b16 %v65
  %v431 = vunpack.c.l.b16 %v66
  %v432 = vunpack.c.h.b16 %v66
  %v433 = vunpack.c.l.b16 %v67
  %v434 = vunpack.c.l.b16 %v68
  %v435 = vunpack.c.h.b16 %v68
  %v436 = vunpack.c.l.b16 %v69
  %v437 = vunpack.c.h.b16 %v69
  %v438 = vunpack.c.l.b16 %v70
  %v439 = vunpack.c.h.b16 %v70
  %v440 = vunpack.c.l.b16 %v71
  %v441 = vunpack.c.h.b16 %v71
  %v442 = vunpack.c.l.b16 %v72
  %v443 = vunpack.c.l.b16 %v73
  %v444 = vunpack.c.h.b16 %v73
  %v445 = vunpack.c.l.b16 %v74
  %v446 = vunpack.c.h.b16 %v74
  %v447 = vunpack.c.l.b16 %v75
  %v448 = vunpack.c.h.b16 %v75
  %v449 = vunpack.c.l.b16 %v76
  %v450 = vunpack.c.h.b16 %v76
  %v451 = vunpack.c.l.b16 %v77
  %v452 = vunpack.c.l.b16 %v78
  %v453 = vunpack.c.h.b16 %v78
  %v454 = vunpack.c.l.b16 %v79
  %v455 = vunpack.c.h.b16 %v79
  %v456 = vunpack.c.l.b16 %v80
  %v457 = vunpack.c.h.b16 %v80
  %v458 = vunpack.c.l.b16 %v81
  %v459 = vunpack.c.h.b16 %v81
  %v460 = vunpack.c.l.b16 %v82
  %v461 = vunpack.c.l.b16 %v83
  %v462 = vunpack.c.h.b16 %v83
  %v463 = vunpack.c.l.b16 %v84
  %v464 = vunpack.c.h.b16 %v84
  %v465 = vunpack.c.l.b16 %v85
  %v466 = vunpack.c.h.b16 %v85
  %v467 = vunpack.c.l.b16 %v86
  %v468 = vunpack.c.h.b16 %v86
  %v469 = vunpack.c.l.b16 %v87
  %v470 = vunpack.c.l.b16 %v88
  %v471 = vunpack.c.h.b16 %v88
  %v472 = vunpack.c.l.b16 %v89
  %v473 = vunpack.c.h.b16 %v89
  %v474 = vunpack.c.l.b16 %v90
  %v475 = vunpack.c.h.b16 %v90
  %v476 = vunpack.c.l.b16 %v91
  %v477 = vunpack.c.h.b16 %v91
  %v478 = vunpack.c.l.b16 %v92
  %v479 = vunpack.c.l.b16 %v93
  %v480 = vunpack.c.h.b16 %v93
  %v481 = vunpack.c.l.b16 %v94
  %v482 = vunpack.c.h.b16 %v94
  %v483 = vunpack.c.l.b16 %v95
  %v484 = vunpack.c.h.b16 %v95
  %v485 = vunpack.c.l.b16 %v96
  %v486 = vunpack.c.h.b16 %v96
  %v487 = vunpack.c.l.b16 %v97
  %v488 = vunpack.c.l.b16 %v98
  %v489 = vunpack.c.h.b16 %v98
  %v490 = vunpack.c.l.b16 %v99
  %v491 = vunpack.c.h.b16 %v99
  %v492 = vunpack.c.l.b16 %v100
  %v493 = vunpack.c.h.b16 %v100
  %v494 = vunpack.c.l.b16 %v101
  %v495 = vunpack.c.h.b16 %v101
  %v496 = vunpack.c.l.b16 %v102
  %v497 = vunpack.c.l.b16 %v103
  %v498 = vunpack.c.h.b16 %v103
  %v499 = vunpack.c.l.b16 %v104
  %v500 = vunpack.c.h.b16 %v104
  %v501 = vunpack.c.l.b16 %v105
  %v502 = vunpack.c.h.b16 %v105
  %v503 = vunpack.c.l.b16 %v106
  %v504 = vunpack.c.h.b16 %v106
  %v505 = vunpack.c.l.b16 %v107
  %v506 = vunpack.c.l.b16 %v108
  %v507 = vunpack.c.h.b16 %v108
  %v508 = vunpack.c.l.b16 %v109
  %v509 = vunpack.c.h.b16 %v109
  %v510 = vunpack.c.l.b16 %v110
  %v511 = vunpack.c.h.b16 %v110
  %v512 = vunpack.c.l.b16 %v111
  %v513 = vunpack.c.h.b16 %v111
  %v514 = vunpack.c.l.b16 %v112
  %v515 = vunpack.c.l.b16 %v113
  %v516 = vunpack.c.h.b16 %v113
  %v517 = vunpack.c.l.b16 %v114
  %v518 = vunpack.c.h.b16 %v114
  %v519 = vunpack.c.l.b16 %v115
  %v520 = vunpack.c.h.b16 %v115
  %v521 = vunpack.c.l.b16 %v116
  %v522 = vunpack.c.h.b16 %v116
  %v523 = vunpack.c.l.b16 %v117
  %v524 = vunpack.c.l.b16 %v118
  %v525 = vunpack.c.h.b16 %v118
  %v526 = vunpack.c.l.b16 %v119
  %v527 = vunpack.c.h.b16 %v119
  %v528 = vunpack.c.l.b16 %v120
  %v529 = vunpack.c.h.b16 %v120
  %v530 = vunpack.c.l.b16 %v121
  %v531 = vunpack.c.h.b16 %v121
  %v532 = vunpack.c.l.b16 %v122
  %v533 = vunpack.c.l.b16 %v123
  %v534 = vunpack.c.h.b16 %v123
  %v535 = vunpack.c.l.b16 %v124
  %v536 = vunpack.c.h.b16 %v124
  %v537 = vunpack.c.l.b16 %v125
  %v538 = vunpack.c.h.b16 %v125
  %v539 = vunpack.c.l.b16 %v126
  %v540 = vunpack.c.h.b16 %v126
  %v541 = vunpack.c.l.b16 %v127
  %v542 = vunpack.c.l.b16 %v128
  %v543 = vunpack.c.h.b16 %v128
  %v544 = vunpack.c.l.b16 %v129
  %v545 = vunpack.c.h.b16 %v129
  %v546 = vunpack.c.l.b16 %v130
  %v547 = vunpack.c.h.b16 %v130
  %v548 = vunpack.c.l.b16 %v131
  %v549 = vunpack.c.h.b16 %v131
  %v550 = vunpack.c.l.b16 %v132
  %v551 = vunpack.c.l.b16 %v133
  %v552 = vunpack.c.h.b16 %v133
  %v553 = vunpack.c.l.b16 %v134
  %v554 = vunpack.c.h.b16 %v134
  %v555 = vunpack.c.l.b16 %v135
  %v556 = vunpack.c.h.b16 %v135
  %v557 = vunpack.c.l.b16 %v136
  %v558 = vunpack.c.h.b16 %v136
  %v559 = vunpack.c.l.b16 %v137
  %v560 = vunpack.c.l.b16 %v138
  %v561 = vunpack.c.h.b16 %v138
  %v562 = vunpack.c.l.b16 %v139
  %v563 = vunpack.c.h.b16 %v139
  %v564 = vunpack.c.l.b16 %v140
  %v565 = vunpack.c.h.b16 %v140
  %v566 = vunpack.c.l.b16 %v141
  %v567 = vunpack.c.h.b16 %v141
  %v568 = vunpack.c.l.b16 %v142
  %v569 = vunpack.c.l.b16 %v143
  %v570 = vunpack.c.h.b16 %v143
  %v571 = vunpack.c.l.b16 %v144
  %v572 = vunpack.c.h.b16 %v144
  %v573 = vunpack.c.l.b16 %v145
  %v574 = vunpack.c.h.b16 %v145
  %v575 = vunpack.c.l.b16 %v146
  %v576 = vunpack.c.h.b16 %v146
  %v577 = vunpack.c.l.b16 %v147
  %v578 = vunpack.c.l.b16 %v148
  %v579 = vunpack.c.h.b16 %v148
  %v580 = vunpack.c.l.b16 %v149
  %v581 = vunpack.c.h.b16 %v149
  %v582 = vunpack.c.l.b16 %v150
  %v583 = vunpack.c.h.b16 %v150
  %v584 = vunpack.c.l.b16 %v151
  %v585 = vunpack.c.h.b16 %v151
  %v586 = vunpack.c.l.b16 %v152
  %v587 = vunpack.c.l.b16 %v153
  %v588 = vunpack.c.h.b16 %v153
  %v589 = vunpack.c.l.b16 %v154
  %v590 = vunpack.c.h.b16 %v154
  %v591 = vunpack.c.l.b16 %v155
  %v592 = vunpack.c.h.b16 %v155
  %v593 = vunpack.c.l.b16 %v156
  %v594 = vunpack.c.h.b16 %v156
  %v595 = vunpack.c.l.b16 %v157
  %v596 = vunpack.c.l.b16 %v158
  %v597 = vunpack.c.h.b16 %v158
  %v598 = vunpack.c.l.b16 %v159
  %v599 = vunpack.c.h.b16 %v159
  %v600 = vunpack.c.l.b16 %v160
  %v601 = vunpack.c.h.b16 %v160
  %v602 = vunpack.c.l.b16 %v161
  %v603 = vunpack.c.h.b16 %v161
  %v604 = vunpack.c.l.b16 %v162
  %v605 = vunpack.c.l.b16 %v163
  %v606 = vunpack.c.h.b16 %v163
  %v607 = vunpack.c.l.b16 %v164
  %v608 = vunpack.c.h.b16 %v164
  %v609 = vunpack.c.l.b16 %v165
  %v610 = vunpack.c.h.b16 %v165
  %v611 = vunpack.c.l.b16 %v166
  %v612 = vunpack.c.h.b16 %v166
  %v613 = vunpack.c.l.b16 %v167
  %v614 = vunpack.c.l.b16 %v168
  %v615 = vunpack.c.h.b16 %v168
  %v616 = vunpack.c.l.b16 %v169
  %v617 = vunpack.c.h.b16 %v169
  %v618 = vunpack.c.l.b16 %v170
  %v619 = vunpack.c.h.b16 %v170
  %v620 = vunpack.c.l.b16 %v171
  %v621 = vunpack.c.h.b16 %v171
  %v622 = vunpack.c.l.b16 %v172
  %v623 = vunpack.c.l.b16 %v173
  %v624 = vunpack.c.h.b16 %v173
  %v625 = vunpack.c.l.b16 %v174
  %v626 = vunpack.c.h.b16 %v174
  %v627 = vunpack.c.l.b16 %v175
  %v628 = vunpack.c.h.b16 %v175
  %v629 = vunpack.c.l.b16 %v176
  %v630 = vunpack.c.h.b16 %v176
  %v631 = vunpack.c.l.b16 %v177
  %v632 = vunpack.c.l.b16 %v178
  %v633 = vunpack.c.h.b16 %v178
  %v634 = vunpack.c.l.b16 %v179
  %v635 = vunpack.c.h.b16 %v179
  %v636 = vunpack.c.l.b16 %v180
  %v637 = vunpack.c.h.b16 %v180
  %v638 = vunpack.c.l.b16 %v181
  %v639 = vunpack.c.h.b16 %v181
  %v640 = vunpack.c.l.b16 %v182
  %v641 = vpack.c.b16 %v362, %v353
  %v642 = vpack.c.b16 %v363, %v354
  %v643 = vpack.c.b16 %v364, %v355
  %v644 = vpack.c.b16 %v365, %v356
  %v645 = vpack.c.b16 %v366, %v357
  %v646 = vpack.c.b16 %v367, %v358
  %v647 = vpack.c.b16 %v368, %v359
  %v648 = vpack.c.b16 %v369, %v360
  %v649 = vpack.c.b16 %v370, %v361
  %v650 = vpack.c.b16 %v380, %v371
  %v651 = vpack.c.b16 %v381, %v372
  %v652 = vpack.c.b16 %v382, %v373
  %v653 = vpack.c.b16 %v383, %v374
  %v654 = vpack.c.b16 %v384, %v375
  %v655 = vpack.c.b16 %v385, %v376
  %v656 = vpack.c.b16 %v386, %v377
  %v657 = vpack.c.b16 %v387, %v378
  %v658 = vpack.c.b16 %v388, %v379
  %v659 = vpack.c.b16 %v398, %v389
  %v660 = vpack.c.b16 %v399, %v390
  %v661 = vpack.c.b16 %v400, %v391
  %v662 = vpack.c.b16 %v401, %v392
  %v663 = vpack.c.b16 %v402, %v393
  %v664 = vpack.c.b16 %v403, %v394
  %v665 = vpack.c.b16 %v404, %v395
  %v666 = vpack.c.b16 %v405, %v396
  %v667 = vpack.c.b16 %v406, %v397
  %v668 = vpack.c.b16 %v416, %v407
  %v669 = vpack.c.b16 %v417, %v408
  %v670 = vpack.c.b16 %v418, %v409
  %v671 = vpack.c.b16 %v419, %v410
  %v672 = vpack.c.b16 %v420, %v411
  %v673 = vpack.c.b16 %v421, %v412
  %v674 = vpack.c.b16 %v422, %v413
  %v675 = vpack.c.b16 %v423, %v414
  %v676 = vpack.c.b16 %v424, %v415
  %v677 = vpack.c.b16 %v434, %v425
  %v678 = vpack.c.b16 %v435, %v426
  %v679 = vpack.c.b16 %v436, %v427
  %v680 = vpack.c.b16 %v437, %v428
  %v681 = vpack.c.b16 %v438, %v429
  %v682 = vpack.c.b16 %v439, %v430
  %v683 = vpack.c.b16 %v440, %v431
  %v684 = vpack.c.b16 %v441, %v432
  %v685 = vpack.c.b16 %v442, %v433
  %v686 = vpack.c.b16 %v452, %v443
  %v687 = vpack.c.b16 %v453, %v444
  %v688 = vpack.c.b16 %v454, %v445
  %v689 = vpack.c.b16 %v455, %v446
  %v690 = vpack.c.b16 %v456, %v447
  %v691 = vpack.c.b16 %v457, %v448
  %v692 = vpack.c.b16 %v458, %v449
  %v693 = vpack.c.b16 %v459, %v450
  %v694 = vpack.c.b16 %v460, %v451
  %v695 = vpack.c.b16 %v470, %v461
  %v696 = vpack.c.b16 %v471, %v462
  %v697 = vpack.c.b16 %v472, %v463
  %v698 = vpack.c.b16 %v473, %v464
  %v699 = vpack.c.b16 %v474, %v465
  %v700 = vpack.c.b16 %v475, %v466
  %v701 = vpack.c.b16 %v476, %v467
  %v702 = vpack.c.b16 %v477, %v468
  %v703 = vpack.c.b16 %v478, %v469
  %v704 = vpack.c.b16 %v488, %v479
  %v705 = vpack.c.b16 %v489, %v480
  %v706 = vpack.c.b16 %v490, %v481
  %v707 = vpack.c.b16 %v491, %v482
  %v708 = vpack.c.b16 %v492, %v483
  %v709 = vpack.c.b16 %v493, %v484
  %v710 = vpack.c.b16 %v494, %v485
  %v711 = vpack.c.b16 %v495, %v486
  %v712 = vpack.c.b16 %v496, %v487
  %v713 = vpack.c.b16 %v506, %v497
  %v714 = vpack.c.b16 %v507, %v498
  %v715 = vpack.c.b16 %v508, %v499
  %v716 = vpack.c.b16 %v509, %v500
  %v717 = vpack.c.b16 %v510, %v501
  %v718 = vpack.c.b16 %v511, %v502
  %v719 = vpack.c.b16 %v512, %v503
  %v720 = vpack.c.b16 %v513, %v504
  %v721 = vpack.c.b16 %v514, %v505
  %v722 = vpack.c.b16 %v524, %v515
  %v723 = vpack.c.b16 %v525, %v516
  %v724 = vpack.c.b16 %v526, %v517
  %v725 = vpack.c.b16 %v527, %v518
  %v726 = vpack.c.b16 %v528, %v519
  %v727 = vpack.c.b16 %v529, %v520
  %v728 = vpack.c.b16 %v530, %v521
  %v729 = vpack.c.b16 %v531, %v522
  %v730 = vpack.c.b16 %v532, %v523
  %v731 = vpack.c.b16 %v542, %v533
  %v732 = vpack.c.b16 %v543, %v534
  %v733 = vpack.c.b16 %v544, %v535
  %v734 = vpack.c.b16 %v545, %v536
  %v735 = vpack.c.b16 %v546, %v537
  %v736 = vpack.c.b16 %v547, %v538
  %v737 = vpack.c.b16 %v548, %v539
  %v738 = vpack.c.b16 %v549, %v540
  %v739 = vpack.c.b16 %v550, %v541
  %v740 = vpack.c.b16 %v560, %v551
  %v741 = vpack.c.b16 %v561, %v552
  %v742 = vpack.c.b16 %v562, %v553
  %v743 = vpack.c.b16 %v563, %v554
  %v744 = vpack.c.b16 %v564, %v555
  %v745 = vpack.c.b16 %v565, %v556
  %v746 = vpack.c.b16 %v566, %v557
  %v747 = vpack.c.b16 %v567, %v558
  %v748 = vpack.c.b16 %v568, %v559
  %v749 = vpack.c.b16 %v578, %v569
  %v750 = vpack.c.b16 %v579, %v570
  %v751 = vpack.c.b16 %v580, %v571
  %v752 = vpack.c.b16 %v581, %v572
  %v753 = vpack.c.b16 %v582, %v573
  %v754 = vpack.c.b16 %v583, %v574
  %v755 = vpack.c.b16 %v584, %v575
  %v756 = vpack.c.b16 %v585, %v576
  %v757 = vpack.c.b16 %v586, %v577
  %v758 = vpack.c.b16 %v596, %v587
  %v759 = vpack.c.b16 %v597, %v588
  %v760 = vpack.c.b16 %v598, %v589
  %v761 = vpack.c.b16 %v599, %v590
  %v762 = vpack.c.b16 %v600, %v591
  %v763 = vpack.c.b16 %v601, %v592
  %v764 = vpack.c.b16 %v602, %v593
  %v765 = vpack.c.b16 %v603, %v594
  %v766 = vpack.c.b16 %v604, %v595
  %v767 = vpack.c.b16 %v614, %v605
  %v768 = vpack.c.b16 %v615, %v606
  %v769 = vpack.c.b16 %v616, %v607
  %v770 = vpack.c.b16 %v617, %v608
  %v771 = vpack.c.b16 %v618, %v609
  %v772 = vpack.c.b16 %v619, %v610
  %v773 = vpack.c.b16 %v620, %v611
  %v774 = vpack.c.b16 %v621, %v612
  %v775 = vpack.c.b16 %v622, %v613
  %v776 = vpack.c.b16 %v632, %v623
  %v777 = vpack.c.b16 %v633, %v624
  %v778 = vpack.c.b16 %v634, %v625
  %v779 = vpack.c.b16 %v635, %v626
  %v780 = vpack.c.b16 %v636, %v627
  %v781 = vpack.c.b16 %v637, %v628
  %v782 = vpack.c.b16 %v638, %v629
  %v783 = vpack.c.b16 %v639, %v630
  %v784 = vpack.c.b16 %v640, %v631
  %929 = vmatprep.subr.bf16.mxu0 %v642
  %930 = vmatpush1.bf16.msra.mxu0 %v641
  %931 = vmatprep.subr.bf16.mxu0 %v651
  %932 = vmatpush1.bf16.msra.mxu0 %v650
  %933 = vmatprep.subr.bf16.mxu0 %v660
  %934 = vmatpush1.bf16.msra.mxu0 %v659
  %935 = vmatprep.subr.bf16.mxu0 %v669
  %936 = vmatpush1.bf16.msra.mxu0 %v668
  %937 = vmatprep.subr.bf16.mxu0 %v678
  %938 = vmatpush1.bf16.msra.mxu0 %v677
  %939 = vmatprep.subr.bf16.mxu0 %v687
  %940 = vmatpush1.bf16.msra.mxu0 %v686
  %941 = vmatprep.subr.bf16.mxu0 %v696
  %942 = vmatpush1.bf16.msra.mxu0 %v695
  %943 = vmatprep.subr.bf16.mxu0 %v705
  %944 = vmatpush1.bf16.msra.mxu0 %v704
  %945 = vmatprep.subr.bf16.mxu0 %v714
  %946 = vmatpush1.bf16.msra.mxu0 %v713
  %947 = vmatprep.subr.bf16.mxu0 %v723
  %948 = vmatpush1.bf16.msra.mxu0 %v722
  %949 = vmatprep.subr.bf16.mxu0 %v732
  %950 = vmatpush1.bf16.msra.mxu0 %v731
  %951 = vmatprep.subr.bf16.mxu0 %v741
  %952 = vmatpush1.bf16.msra.mxu0 %v740
  %953 = vmatprep.subr.bf16.mxu0 %v750
  %954 = vmatpush1.bf16.msra.mxu0 %v749
  %955 = vmatprep.subr.bf16.mxu0 %v759
  %956 = vmatpush1.bf16.msra.mxu0 %v758
  %957 = vmatprep.subr.bf16.mxu0 %v768
  %958 = vmatpush1.bf16.msra.mxu0 %v767
  %959 = vmatprep.subr.bf16.mxu0 %v777
  %960 = vmatpush1.bf16.msra.mxu0 %v776
  %961 = vmatprep.mubr.bf16.mxu0 %v190
  %962 = vmatmul.mubr.bf16.gmra.mrb[0].mxu0 %v189
  %v963 = vpop.f32.mrb[0].mxu0
  %v964 = vadd.f32 0.0, %v963
  %v965 = vpop.f32.mrb[0].mxu0
  %v966 = vadd.f32 0.0, %v965
  %v967 = vpop.f32.mrb[0].mxu0
  %v968 = vadd.f32 0.0, %v967
  %v969 = vpop.f32.mrb[0].mxu0
  %v970 = vadd.f32 0.0, %v969
  %971 = vdwg.mxu0
  %972 = vmatprep.subr.bf16.mxu0 %v644
  %973 = vmatpush1.bf16.msra.mxu0 %v643
  %974 = vmatprep.subr.bf16.mxu0 %v653
  %975 = vmatpush1.bf16.msra.mxu0 %v652
  %976 = vmatprep.subr.bf16.mxu0 %v662
  %977 = vmatpush1.bf16.msra.mxu0 %v661
  %978 = vmatprep.subr.bf16.mxu0 %v671
  %979 = vmatpush1.bf16.msra.mxu0 %v670
  %980 = vmatprep.subr.bf16.mxu0 %v680
  %981 = vmatpush1.bf16.msra.mxu0 %v679
  %982 = vmatprep.subr.bf16.mxu0 %v689
  %983 = vmatpush1.bf16.msra.mxu0 %v688
  %984 = vmatprep.subr.bf16.mxu0 %v698
  %985 = vmatpush1.bf16.msra.mxu0 %v697
  %986 = vmatprep.subr.bf16.mxu0 %v707
  %987 = vmatpush1.bf16.msra.mxu0 %v706
  %988 = vmatprep.subr.bf16.mxu0 %v716
  %989 = vmatpush1.bf16.msra.mxu0 %v715
  %990 = vmatprep.subr.bf16.mxu0 %v725
  %991 = vmatpush1.bf16.msra.mxu0 %v724
  %992 = vmatprep.subr.bf16.mxu0 %v734
  %993 = vmatpush1.bf16.msra.mxu0 %v733
  %994 = vmatprep.subr.bf16.mxu0 %v743
  %995 = vmatpush1.bf16.msra.mxu0 %v742
  %996 = vmatprep.subr.bf16.mxu0 %v752
  %997 = vmatpush1.bf16.msra.mxu0 %v751
  %998 = vmatprep.subr.bf16.mxu0 %v761
  %999 = vmatpush1.bf16.msra.mxu0 %v760
  %1000 = vmatprep.subr.bf16.mxu0 %v770
  %1001 = vmatpush1.bf16.msra.mxu0 %v769
  %1002 = vmatprep.subr.bf16.mxu0 %v779
  %1003 = vmatpush1.bf16.msra.mxu0 %v778
  %1004 = vmatprep.mubr.bf16.mxu0 %v190
  %1005 = vmatmul.mubr.bf16.gmra.mrb[0].mxu0 %v189
  %v1006 = vpop.f32.mrb[0].mxu0
  %v1007 = vadd.f32 0.0, %v1006
  %v1008 = vpop.f32.mrb[0].mxu0
  %v1009 = vadd.f32 0.0, %v1008
  %v1010 = vpop.f32.mrb[0].mxu0
  %v1011 = vadd.f32 0.0, %v1010
  %v1012 = vpop.f32.mrb[0].mxu0
  %v1013 = vadd.f32 0.0, %v1012
  %1014 = vdwg.mxu0
  %1015 = vmatprep.subr.bf16.mxu0 %v646
  %1016 = vmatpush1.bf16.msra.mxu0 %v645
  %1017 = vmatprep.subr.bf16.mxu0 %v655
  %1018 = vmatpush1.bf16.msra.mxu0 %v654
  %1019 = vmatprep.subr.bf16.mxu0 %v664
  %1020 = vmatpush1.bf16.msra.mxu0 %v663
  %1021 = vmatprep.subr.bf16.mxu0 %v673
  %1022 = vmatpush1.bf16.msra.mxu0 %v672
  %1023 = vmatprep.subr.bf16.mxu0 %v682
  %1024 = vmatpush1.bf16.msra.mxu0 %v681
  %1025 = vmatprep.subr.bf16.mxu0 %v691
  %1026 = vmatpush1.bf16.msra.mxu0 %v690
  %1027 = vmatprep.subr.bf16.mxu0 %v700
  %1028 = vmatpush1.bf16.msra.mxu0 %v699
  %1029 = vmatprep.subr.bf16.mxu0 %v709
  %1030 = vmatpush1.bf16.msra.mxu0 %v708
  %1031 = vmatprep.subr.bf16.mxu0 %v718
  %1032 = vmatpush1.bf16.msra.mxu0 %v717
  %1033 = vmatprep.subr.bf16.mxu0 %v727
  %1034 = vmatpush1.bf16.msra.mxu0 %v726
  %1035 = vmatprep.subr.bf16.mxu0 %v736
  %1036 = vmatpush1.bf16.msra.mxu0 %v735
  %1037 = vmatprep.subr.bf16.mxu0 %v745
  %1038 = vmatpush1.bf16.msra.mxu0 %v744
  %1039 = vmatprep.subr.bf16.mxu0 %v754
  %1040 = vmatpush1.bf16.msra.mxu0 %v753
  %1041 = vmatprep.subr.bf16.mxu0 %v763
  %1042 = vmatpush1.bf16.msra.mxu0 %v762
  %1043 = vmatprep.subr.bf16.mxu0 %v772
  %1044 = vmatpush1.bf16.msra.mxu0 %v771
  %1045 = vmatprep.subr.bf16.mxu0 %v781
  %1046 = vmatpush1.bf16.msra.mxu0 %v780
  %1047 = vmatprep.mubr.bf16.mxu0 %v190
  %1048 = vmatmul.mubr.bf16.gmra.mrb[0].mxu0 %v189
  %v1049 = vpop.f32.mrb[0].mxu0
  %v1050 = vadd.f32 0.0, %v1049
  %v1051 = vpop.f32.mrb[0].mxu0
  %v1052 = vadd.f32 0.0, %v1051
  %v1053 = vpop.f32.mrb[0].mxu0
  %v1054 = vadd.f32 0.0, %v1053
  %v1055 = vpop.f32.mrb[0].mxu0
  %v1056 = vadd.f32 0.0, %v1055
  %1057 = vdwg.mxu0
  %1058 = vmatprep.subr.bf16.mxu0 %v648
  %1059 = vmatpush1.bf16.msra.mxu0 %v647
  %1060 = vmatprep.subr.bf16.mxu0 %v657
  %1061 = vmatpush1.bf16.msra.mxu0 %v656
  %1062 = vmatprep.subr.bf16.mxu0 %v666
  %1063 = vmatpush1.bf16.msra.mxu0 %v665
  %1064 = vmatprep.subr.bf16.mxu0 %v675
  %1065 = vmatpush1.bf16.msra.mxu0 %v674
  %1066 = vmatprep.subr.bf16.mxu0 %v684
  %1067 = vmatpush1.bf16.msra.mxu0 %v683
  %1068 = vmatprep.subr.bf16.mxu0 %v693
  %1069 = vmatpush1.bf16.msra.mxu0 %v692
  %1070 = vmatprep.subr.bf16.mxu0 %v702
  %1071 = vmatpush1.bf16.msra.mxu0 %v701
  %1072 = vmatprep.subr.bf16.mxu0 %v711
  %1073 = vmatpush1.bf16.msra.mxu0 %v710
  %1074 = vmatprep.subr.bf16.mxu0 %v720
  %1075 = vmatpush1.bf16.msra.mxu0 %v719
  %1076 = vmatprep.subr.bf16.mxu0 %v729
  %1077 = vmatpush1.bf16.msra.mxu0 %v728
  %1078 = vmatprep.subr.bf16.mxu0 %v738
  %1079 = vmatpush1.bf16.msra.mxu0 %v737
  %1080 = vmatprep.subr.bf16.mxu0 %v747
  %1081 = vmatpush1.bf16.msra.mxu0 %v746
  %1082 = vmatprep.subr.bf16.mxu0 %v756
  %1083 = vmatpush1.bf16.msra.mxu0 %v755
  %1084 = vmatprep.subr.bf16.mxu0 %v765
  %1085 = vmatpush1.bf16.msra.mxu0 %v764
  %1086 = vmatprep.subr.bf16.mxu0 %v774
  %1087 = vmatpush1.bf16.msra.mxu0 %v773
  %1088 = vmatprep.subr.bf16.mxu0 %v783
  %1089 = vmatpush1.bf16.msra.mxu0 %v782
  %1090 = vmatprep.mubr.bf16.mxu0 %v190
  %1091 = vmatmul.mubr.bf16.gmra.mrb[0].mxu0 %v189
  %v1092 = vpop.f32.mrb[0].mxu0
  %v1093 = vadd.f32 0.0, %v1092
  %v1094 = vpop.f32.mrb[0].mxu0
  %v1095 = vadd.f32 0.0, %v1094
  %v1096 = vpop.f32.mrb[0].mxu0
  %v1097 = vadd.f32 0.0, %v1096
  %v1098 = vpop.f32.mrb[0].mxu0
  %v1099 = vadd.f32 0.0, %v1098
  %1100 = vdwg.mxu0
  %1101 = vmatprep.subr.bf16.mxu0 0
  %1102 = vmatpush1.bf16.msra.mxu0 %v649
  %1103 = vmatprep.subr.bf16.mxu0 0
  %1104 = vmatpush1.bf16.msra.mxu0 %v658
  %1105 = vmatprep.subr.bf16.mxu0 0
  %1106 = vmatpush1.bf16.msra.mxu0 %v667
  %1107 = vmatprep.subr.bf16.mxu0 0
  %1108 = vmatpush1.bf16.msra.mxu0 %v676
  %1109 = vmatprep.subr.bf16.mxu0 0
  %1110 = vmatpush1.bf16.msra.mxu0 %v685
  %1111 = vmatprep.subr.bf16.mxu0 0
  %1112 = vmatpush1.bf16.msra.mxu0 %v694
  %1113 = vmatprep.subr.bf16.mxu0 0
  %1114 = vmatpush1.bf16.msra.mxu0 %v703
  %1115 = vmatprep.subr.bf16.mxu0 0
  %1116 = vmatpush1.bf16.msra.mxu0 %v712
  %1117 = vmatprep.subr.bf16.mxu0 0
  %1118 = vmatpush1.bf16.msra.mxu0 %v721
  %1119 = vmatprep.subr.bf16.mxu0 0
  %1120 = vmatpush1.bf16.msra.mxu0 %v730
  %1121 = vmatprep.subr.bf16.mxu0 0
  %1122 = vmatpush1.bf16.msra.mxu0 %v739
  %1123 = vmatprep.subr.bf16.mxu0 0
  %1124 = vmatpush1.bf16.msra.mxu0 %v748
  %1125 = vmatprep.subr.bf16.mxu0 0
  %1126 = vmatpush1.bf16.msra.mxu0 %v757
  %1127 = vmatprep.subr.bf16.mxu0 0
  %1128 = vmatpush1.bf16.msra.mxu0 %v766
  %1129 = vmatprep.subr.bf16.mxu0 0
  %1130 = vmatpush1.bf16.msra.mxu0 %v775
  %1131 = vmatprep.subr.bf16.mxu0 0
  %1132 = vmatpush1.bf16.msra.mxu0 %v784
  %1133 = vmatprep.mubr.bf16.mxu0 %v190
  %1134 = vmatmul.mubr.bf16.gmra.mrb[0].mxu0 %v189
  %v1135 = vpop.f32.mrb[0].mxu0
  %v1136 = vadd.f32 0.0, %v1135
  %v1137 = vpop.f32.mrb[0].mxu0
  %v1138 = vpop.f32.mrb[0].mxu0
  %v1139 = vadd.f32 0.0, %v1138
  %v1140 = vpop.f32.mrb[0].mxu0
  %1141 = vdwg.mxu0
  %v1142 = vlaneseq
  %v1143 = vand.u32 %v1142, 127
  %v1144 = vadd.s32 %v1143, 128
  %v1145 = vadd.s32 %v1143, 256
  %v1146 = vadd.s32 %v1143, 384
  %v1147 = vadd.s32 %v1143, 512
  %v1148 = vadd.s32 %v1143, 640
  %v1149 = vadd.s32 %v1143, 768
  %v1150 = vadd.s32 %v1143, 896
  %v1151 = vand.u32 %v1143, 31
  %v1152 = vand.u32 %v1144, 31
  %v1153 = vand.u32 %v1145, 31
  %v1154 = vand.u32 %v1146, 31
  %v1155 = vand.u32 %v1147, 31
  %v1156 = vand.u32 %v1148, 31
  %v1157 = vand.u32 %v1149, 31
  %v1158 = vand.u32 %v1150, 31
  %vm1159 = vcmp.ge.s32.totalorder %v1151, 1
  %vm1160 = vcmp.ge.s32.totalorder %v1152, 1
  %vm1161 = vcmp.ge.s32.totalorder %v1153, 1
  %vm1162 = vcmp.ge.s32.totalorder %v1154, 1
  %vm1163 = vcmp.ge.s32.totalorder %v1155, 1
  %vm1164 = vcmp.ge.s32.totalorder %v1156, 1
  %vm1165 = vcmp.ge.s32.totalorder %v1157, 1
  %vm1166 = vcmp.ge.s32.totalorder %v1158, 1
  %v1167 = vsel %vm1159, 1, 0
  %v1168 = vsel %vm1160, 1, 0
  %v1169 = vsel %vm1161, 1, 0
  %v1170 = vsel %vm1162, 1, 0
  %v1171 = vsel %vm1163, 1, 0
  %v1172 = vsel %vm1164, 1, 0
  %v1173 = vsel %vm1165, 1, 0
  %v1174 = vsel %vm1166, 1, 0
  %vm1175 = vcmp.eq.s32.totalorder %v1167, 1
  %vm1176 = vcmp.eq.s32.totalorder %v1168, 1
  %vm1177 = vcmp.eq.s32.totalorder %v1169, 1
  %vm1178 = vcmp.eq.s32.totalorder %v1170, 1
  %vm1179 = vcmp.eq.s32.totalorder %v1171, 1
  %vm1180 = vcmp.eq.s32.totalorder %v1172, 1
  %vm1181 = vcmp.eq.s32.totalorder %v1173, 1
  %vm1182 = vcmp.eq.s32.totalorder %v1174, 1
  %v1183 = vsel %vm1175, %v964, 0.0
  %v1184 = vsel %vm1176, %v966, 0.0
  %v1185 = vsel %vm1177, %v1007, 0.0
  %v1186 = vsel %vm1178, %v1009, 0.0
  %v1187 = vsel %vm1179, %v1050, 0.0
  %v1188 = vsel %vm1180, %v1052, 0.0
  %v1189 = vsel %vm1181, %v1093, 0.0
  %v1190 = vsel %vm1182, %v1095, 0.0
  %v1191 = vsel %vm1175, %v968, 0.0
  %v1192 = vsel %vm1176, %v970, 0.0
  %v1193 = vsel %vm1177, %v1011, 0.0
  %v1194 = vsel %vm1178, %v1013, 0.0
  %v1195 = vsel %vm1179, %v1054, 0.0
  %v1196 = vsel %vm1180, %v1056, 0.0
  %v1197 = vsel %vm1181, %v1097, 0.0
  %v1198 = vsel %vm1182, %v1099, 0.0
  %1199 = vst [vmem:[#allocation2] sm:$0xff] %v1183
  %1200 = vst [vmem:[#allocation2 + $0x8] sm:$0xff] %v1184
  %1201 = vst [vmem:[#allocation2 + $0x10] sm:$0xff] %v1185
  %1202 = vst [vmem:[#allocation2 + $0x18] sm:$0xff] %v1186
  %1203 = vst [vmem:[#allocation2 + $0x20] sm:$0xff] %v1187
  %1204 = vst [vmem:[#allocation2 + $0x28] sm:$0xff] %v1188
  %1205 = vst [vmem:[#allocation2 + $0x30] sm:$0xff] %v1189
  %1206 = vst [vmem:[#allocation2 + $0x38] sm:$0xff] %v1190
  %1207 = vst [vmem:[#allocation2 + $0x40] sm:$0xff] %v1191
  %1208 = vst [vmem:[#allocation2 + $0x48] sm:$0xff] %v1192
  %1209 = vst [vmem:[#allocation2 + $0x50] sm:$0xff] %v1193
  %1210 = vst [vmem:[#allocation2 + $0x58] sm:$0xff] %v1194
  %1211 = vst [vmem:[#allocation2 + $0x60] sm:$0xff] %v1195
  %1212 = vst [vmem:[#allocation2 + $0x68] sm:$0xff] %v1196
  %1213 = vst [vmem:[#allocation2 + $0x70] sm:$0xff] %v1197
  %1214 = vst [vmem:[#allocation2 + $0x78] sm:$0xff] %v1198
  %1224 = vrot.lane.b32.xlu0 %v964, 127
  %v1225 = vpop.permute.xlu0 %1224
  %1226 = vrot.lane.b32.xlu0 %v966, 127
  %v1227 = vpop.permute.xlu0 %1226
  %1228 = vrot.lane.b32.xlu0 %v1007, 127
  %v1229 = vpop.permute.xlu0 %1228
  %1230 = vrot.lane.b32.xlu0 %v1009, 127
  %v1231 = vpop.permute.xlu0 %1230
  %1232 = vrot.lane.b32.xlu0 %v1050, 127
  %v1233 = vpop.permute.xlu0 %1232
  %1234 = vrot.lane.b32.xlu0 %v1052, 127
  %v1235 = vpop.permute.xlu0 %1234
  %1236 = vrot.lane.b32.xlu0 %v1093, 127
  %v1237 = vpop.permute.xlu0 %1236
  %1238 = vrot.lane.b32.xlu0 %v1095, 127
  %v1239 = vpop.permute.xlu0 %1238
  %1240 = vrot.lane.b32.xlu0 %v1136, 127
  %v1241 = vpop.permute.xlu0 %1240
  %vm1242 = vcmask 1039360
  %v1243 = vsel %vm1242, %v1225, %v1227
  %v1244 = vsel %vm1242, %v1227, %v1229
  %v1245 = vsel %vm1242, %v1229, %v1231
  %v1246 = vsel %vm1242, %v1231, %v1233
  %v1247 = vsel %vm1242, %v1233, %v1235
  %v1248 = vsel %vm1242, %v1235, %v1237
  %v1249 = vsel %vm1242, %v1237, %v1239
  %v1250 = vsel %vm1242, %v1239, %v1241
  %1259 = vst [vmem:[#allocation2 + $0x80] sm:$0xff] %v1243
  %1260 = vst [vmem:[#allocation2 + $0x88] sm:$0xff] %v1244
  %1261 = vst [vmem:[#allocation2 + $0x90] sm:$0xff] %v1245
  %1262 = vst [vmem:[#allocation2 + $0x98] sm:$0xff] %v1246
  %1263 = vst [vmem:[#allocation2 + $0xa0] sm:$0xff] %v1247
  %1264 = vst [vmem:[#allocation2 + $0xa8] sm:$0xff] %v1248
  %1265 = vst [vmem:[#allocation2 + $0xb0] sm:$0xff] %v1249
  %1266 = vst [vmem:[#allocation2 + $0xb8] sm:$0xff] %v1250
  %1276 = vrot.lane.b32.xlu0 %v968, 127
  %v1277 = vpop.permute.xlu0 %1276
  %1278 = vrot.lane.b32.xlu0 %v970, 127
  %v1279 = vpop.permute.xlu0 %1278
  %1280 = vrot.lane.b32.xlu0 %v1011, 127
  %v1281 = vpop.permute.xlu0 %1280
  %1282 = vrot.lane.b32.xlu0 %v1013, 127
  %v1283 = vpop.permute.xlu0 %1282
  %1284 = vrot.lane.b32.xlu0 %v1054, 127
  %v1285 = vpop.permute.xlu0 %1284
  %1286 = vrot.lane.b32.xlu0 %v1056, 127
  %v1287 = vpop.permute.xlu0 %1286
  %1288 = vrot.lane.b32.xlu0 %v1097, 127
  %v1289 = vpop.permute.xlu0 %1288
  %1290 = vrot.lane.b32.xlu0 %v1099, 127
  %v1291 = vpop.permute.xlu0 %1290
  %1292 = vrot.lane.b32.xlu0 %v1139, 127
  %v1293 = vpop.permute.xlu0 %1292
  %v1294 = vsel %vm1242, %v1277, %v1279
  %v1295 = vsel %vm1242, %v1279, %v1281
  %v1296 = vsel %vm1242, %v1281, %v1283
  %v1297 = vsel %vm1242, %v1283, %v1285
  %v1298 = vsel %vm1242, %v1285, %v1287
  %v1299 = vsel %vm1242, %v1287, %v1289
  %v1300 = vsel %vm1242, %v1289, %v1291
  %v1301 = vsel %vm1242, %v1291, %v1293
  %1310 = vst [vmem:[#allocation2 + $0xc0] sm:$0xff] %v1294
  %1311 = vst [vmem:[#allocation2 + $0xc8] sm:$0xff] %v1295
  %1312 = vst [vmem:[#allocation2 + $0xd0] sm:$0xff] %v1296
  %1313 = vst [vmem:[#allocation2 + $0xd8] sm:$0xff] %v1297
  %1314 = vst [vmem:[#allocation2 + $0xe0] sm:$0xff] %v1298
  %1315 = vst [vmem:[#allocation2 + $0xe8] sm:$0xff] %v1299
  %1316 = vst [vmem:[#allocation2 + $0xf0] sm:$0xff] %v1300
  %1317 = vst [vmem:[#allocation2 + $0xf8] sm:$0xff] %v1301
  %vm1318 = vcmp.le.s32.totalorder %v1151, 30
  %vm1319 = vcmp.le.s32.totalorder %v1152, 30
  %vm1320 = vcmp.le.s32.totalorder %v1153, 30
  %vm1321 = vcmp.le.s32.totalorder %v1154, 30
  %vm1322 = vcmp.le.s32.totalorder %v1155, 30
  %vm1323 = vcmp.le.s32.totalorder %v1156, 30
  %vm1324 = vcmp.le.s32.totalorder %v1157, 30
  %vm1325 = vcmp.le.s32.totalorder %v1158, 30
  %v1326 = vsel %vm1318, 1, 0
  %v1327 = vsel %vm1319, 1, 0
  %v1328 = vsel %vm1320, 1, 0
  %v1329 = vsel %vm1321, 1, 0
  %v1330 = vsel %vm1322, 1, 0
  %v1331 = vsel %vm1323, 1, 0
  %v1332 = vsel %vm1324, 1, 0
  %v1333 = vsel %vm1325, 1, 0
  %vm1334 = vcmp.eq.s32.totalorder %v1326, 1
  %vm1335 = vcmp.eq.s32.totalorder %v1327, 1
  %vm1336 = vcmp.eq.s32.totalorder %v1328, 1
  %vm1337 = vcmp.eq.s32.totalorder %v1329, 1
  %vm1338 = vcmp.eq.s32.totalorder %v1330, 1
  %vm1339 = vcmp.eq.s32.totalorder %v1331, 1
  %vm1340 = vcmp.eq.s32.totalorder %v1332, 1
  %vm1341 = vcmp.eq.s32.totalorder %v1333, 1
  %1342 = vrot.lane.b32.xlu0 %v964, 126
  %v1343 = vpop.permute.xlu0 %1342
  %1344 = vrot.lane.b32.xlu0 %v966, 126
  %v1345 = vpop.permute.xlu0 %1344
  %1346 = vrot.lane.b32.xlu0 %v1007, 126
  %v1347 = vpop.permute.xlu0 %1346
  %1348 = vrot.lane.b32.xlu0 %v1009, 126
  %v1349 = vpop.permute.xlu0 %1348
  %1350 = vrot.lane.b32.xlu0 %v1050, 126
  %v1351 = vpop.permute.xlu0 %1350
  %1352 = vrot.lane.b32.xlu0 %v1052, 126
  %v1353 = vpop.permute.xlu0 %1352
  %1354 = vrot.lane.b32.xlu0 %v1093, 126
  %v1355 = vpop.permute.xlu0 %1354
  %1356 = vrot.lane.b32.xlu0 %v1095, 126
  %v1357 = vpop.permute.xlu0 %1356
  %1358 = vrot.lane.b32.xlu0 %v1136, 126
  %v1359 = vpop.permute.xlu0 %1358
  %1360 = vrot.lane.b32.xlu0 %v968, 126
  %v1361 = vpop.permute.xlu0 %1360
  %1362 = vrot.lane.b32.xlu0 %v970, 126
  %v1363 = vpop.permute.xlu0 %1362
  %1364 = vrot.lane.b32.xlu0 %v1011, 126
  %v1365 = vpop.permute.xlu0 %1364
  %1366 = vrot.lane.b32.xlu0 %v1013, 126
  %v1367 = vpop.permute.xlu0 %1366
  %1368 = vrot.lane.b32.xlu0 %v1054, 126
  %v1369 = vpop.permute.xlu0 %1368
  %1370 = vrot.lane.b32.xlu0 %v1056, 126
  %v1371 = vpop.permute.xlu0 %1370
  %1372 = vrot.lane.b32.xlu0 %v1097, 126
  %v1373 = vpop.permute.xlu0 %1372
  %1374 = vrot.lane.b32.xlu0 %v1099, 126
  %v1375 = vpop.permute.xlu0 %1374
  %1376 = vrot.lane.b32.xlu0 %v1139, 126
  %v1377 = vpop.permute.xlu0 %1376
  %vm1378 = vcmask 1031168
  %v1379 = vsel %vm1378, %v1343, %v1345
  %v1380 = vsel %vm1378, %v1345, %v1347
  %v1381 = vsel %vm1378, %v1347, %v1349
  %v1382 = vsel %vm1378, %v1349, %v1351
  %v1383 = vsel %vm1378, %v1351, %v1353
  %v1384 = vsel %vm1378, %v1353, %v1355
  %v1385 = vsel %vm1378, %v1355, %v1357
  %v1386 = vsel %vm1378, %v1357, %v1359
  %v1387 = vsel %vm1378, %v1361, %v1363
  %v1388 = vsel %vm1378, %v1363, %v1365
  %v1389 = vsel %vm1378, %v1365, %v1367
  %v1390 = vsel %vm1378, %v1367, %v1369
  %v1391 = vsel %vm1378, %v1369, %v1371
  %v1392 = vsel %vm1378, %v1371, %v1373
  %v1393 = vsel %vm1378, %v1373, %v1375
  %v1394 = vsel %vm1378, %v1375, %v1377
  %v1411 = vsel %vm1334, %v1379, 0.0
  %v1412 = vsel %vm1335, %v1380, 0.0
  %v1413 = vsel %vm1336, %v1381, 0.0
  %v1414 = vsel %vm1337, %v1382, 0.0
  %v1415 = vsel %vm1338, %v1383, 0.0
  %v1416 = vsel %vm1339, %v1384, 0.0
  %v1417 = vsel %vm1340, %v1385, 0.0
  %v1418 = vsel %vm1341, %v1386, 0.0
  %v1419 = vsel %vm1334, %v1387, 0.0
  %v1420 = vsel %vm1335, %v1388, 0.0
  %v1421 = vsel %vm1336, %v1389, 0.0
  %v1422 = vsel %vm1337, %v1390, 0.0
  %v1423 = vsel %vm1338, %v1391, 0.0
  %v1424 = vsel %vm1339, %v1392, 0.0
  %v1425 = vsel %vm1340, %v1393, 0.0
  %v1426 = vsel %vm1341, %v1394, 0.0
  %1427 = vst [vmem:[#allocation2 + $0x100] sm:$0xff] %v1411
  %1428 = vst [vmem:[#allocation2 + $0x108] sm:$0xff] %v1412
  %1429 = vst [vmem:[#allocation2 + $0x110] sm:$0xff] %v1413
  %1430 = vst [vmem:[#allocation2 + $0x118] sm:$0xff] %v1414
  %1431 = vst [vmem:[#allocation2 + $0x120] sm:$0xff] %v1415
  %1432 = vst [vmem:[#allocation2 + $0x128] sm:$0xff] %v1416
  %1433 = vst [vmem:[#allocation2 + $0x130] sm:$0xff] %v1417
  %1434 = vst [vmem:[#allocation2 + $0x138] sm:$0xff] %v1418
  %1435 = vst [vmem:[#allocation2 + $0x140] sm:$0xff] %v1419
  %1436 = vst [vmem:[#allocation2 + $0x148] sm:$0xff] %v1420
  %1437 = vst [vmem:[#allocation2 + $0x150] sm:$0xff] %v1421
  %1438 = vst [vmem:[#allocation2 + $0x158] sm:$0xff] %v1422
  %1439 = vst [vmem:[#allocation2 + $0x160] sm:$0xff] %v1423
  %1440 = vst [vmem:[#allocation2 + $0x168] sm:$0xff] %v1424
  %1441 = vst [vmem:[#allocation2 + $0x170] sm:$0xff] %v1425
  %1442 = vst [vmem:[#allocation2 + $0x178] sm:$0xff] %v1426
  %1443 = vrot.lane.b32.xlu0 %v964, 96
  %v1444 = vpop.permute.xlu0 %1443
  %1445 = vrot.lane.b32.xlu0 %v966, 96
  %v1446 = vpop.permute.xlu0 %1445
  %1447 = vrot.lane.b32.xlu0 %v1007, 96
  %v1448 = vpop.permute.xlu0 %1447
  %1449 = vrot.lane.b32.xlu0 %v1009, 96
  %v1450 = vpop.permute.xlu0 %1449
  %1451 = vrot.lane.b32.xlu0 %v1050, 96
  %v1452 = vpop.permute.xlu0 %1451
  %1453 = vrot.lane.b32.xlu0 %v1052, 96
  %v1454 = vpop.permute.xlu0 %1453
  %1455 = vrot.lane.b32.xlu0 %v1093, 96
  %v1456 = vpop.permute.xlu0 %1455
  %1457 = vrot.lane.b32.xlu0 %v1095, 96
  %v1458 = vpop.permute.xlu0 %1457
  %1459 = vrot.lane.b32.xlu0 %v1136, 96
  %v1460 = vpop.permute.xlu0 %1459
  %1461 = vrot.lane.b32.xlu0 %v968, 96
  %v1462 = vpop.permute.xlu0 %1461
  %1463 = vrot.lane.b32.xlu0 %v970, 96
  %v1464 = vpop.permute.xlu0 %1463
  %1465 = vrot.lane.b32.xlu0 %v1011, 96
  %v1466 = vpop.permute.xlu0 %1465
  %1467 = vrot.lane.b32.xlu0 %v1013, 96
  %v1468 = vpop.permute.xlu0 %1467
  %1469 = vrot.lane.b32.xlu0 %v1054, 96
  %v1470 = vpop.permute.xlu0 %1469
  %1471 = vrot.lane.b32.xlu0 %v1056, 96
  %v1472 = vpop.permute.xlu0 %1471
  %1473 = vrot.lane.b32.xlu0 %v1097, 96
  %v1474 = vpop.permute.xlu0 %1473
  %1475 = vrot.lane.b32.xlu0 %v1099, 96
  %v1476 = vpop.permute.xlu0 %1475
  %1477 = vrot.lane.b32.xlu0 %v1139, 96
  %v1478 = vpop.permute.xlu0 %1477
  %vm1479 = vcmask 785408
  %v1480 = vsel %vm1479, %v1444, %v1446
  %v1481 = vsel %vm1479, %v1446, %v1448
  %v1482 = vsel %vm1479, %v1448, %v1450
  %v1483 = vsel %vm1479, %v1450, %v1452
  %v1484 = vsel %vm1479, %v1452, %v1454
  %v1485 = vsel %vm1479, %v1454, %v1456
  %v1486 = vsel %vm1479, %v1456, %v1458
  %v1487 = vsel %vm1479, %v1458, %v1460
  %v1488 = vsel %vm1479, %v1462, %v1464
  %v1489 = vsel %vm1479, %v1464, %v1466
  %v1490 = vsel %vm1479, %v1466, %v1468
  %v1491 = vsel %vm1479, %v1468, %v1470
  %v1492 = vsel %vm1479, %v1470, %v1472
  %v1493 = vsel %vm1479, %v1472, %v1474
  %v1494 = vsel %vm1479, %v1474, %v1476
  %v1495 = vsel %vm1479, %v1476, %v1478
  %v1512 = vsel %vm1175, %v1480, 0.0
  %v1513 = vsel %vm1176, %v1481, 0.0
  %v1514 = vsel %vm1177, %v1482, 0.0
  %v1515 = vsel %vm1178, %v1483, 0.0
  %v1516 = vsel %vm1179, %v1484, 0.0
  %v1517 = vsel %vm1180, %v1485, 0.0
  %v1518 = vsel %vm1181, %v1486, 0.0
  %v1519 = vsel %vm1182, %v1487, 0.0
  %v1520 = vsel %vm1175, %v1488, 0.0
  %v1521 = vsel %vm1176, %v1489, 0.0
  %v1522 = vsel %vm1177, %v1490, 0.0
  %v1523 = vsel %vm1178, %v1491, 0.0
  %v1524 = vsel %vm1179, %v1492, 0.0
  %v1525 = vsel %vm1180, %v1493, 0.0
  %v1526 = vsel %vm1181, %v1494, 0.0
  %v1527 = vsel %vm1182, %v1495, 0.0
  %1528 = vst [vmem:[#allocation2 + $0x180] sm:$0xff] %v1512
  %1529 = vst [vmem:[#allocation2 + $0x188] sm:$0xff] %v1513
  %1530 = vst [vmem:[#allocation2 + $0x190] sm:$0xff] %v1514
  %1531 = vst [vmem:[#allocation2 + $0x198] sm:$0xff] %v1515
  %1532 = vst [vmem:[#allocation2 + $0x1a0] sm:$0xff] %v1516
  %1533 = vst [vmem:[#allocation2 + $0x1a8] sm:$0xff] %v1517
  %1534 = vst [vmem:[#allocation2 + $0x1b0] sm:$0xff] %v1518
  %1535 = vst [vmem:[#allocation2 + $0x1b8] sm:$0xff] %v1519
  %1536 = vst [vmem:[#allocation2 + $0x1c0] sm:$0xff] %v1520
  %1537 = vst [vmem:[#allocation2 + $0x1c8] sm:$0xff] %v1521
  %1538 = vst [vmem:[#allocation2 + $0x1d0] sm:$0xff] %v1522
  %1539 = vst [vmem:[#allocation2 + $0x1d8] sm:$0xff] %v1523
  %1540 = vst [vmem:[#allocation2 + $0x1e0] sm:$0xff] %v1524
  %1541 = vst [vmem:[#allocation2 + $0x1e8] sm:$0xff] %v1525
  %1542 = vst [vmem:[#allocation2 + $0x1f0] sm:$0xff] %v1526
  %1543 = vst [vmem:[#allocation2 + $0x1f8] sm:$0xff] %v1527
  %1544 = vrot.lane.b32.xlu0 %v964, 95
  %v1545 = vpop.permute.xlu0 %1544
  %1546 = vrot.lane.b32.xlu0 %v966, 95
  %v1547 = vpop.permute.xlu0 %1546
  %1548 = vrot.lane.b32.xlu0 %v1007, 95
  %v1549 = vpop.permute.xlu0 %1548
  %1550 = vrot.lane.b32.xlu0 %v1009, 95
  %v1551 = vpop.permute.xlu0 %1550
  %1552 = vrot.lane.b32.xlu0 %v1050, 95
  %v1553 = vpop.permute.xlu0 %1552
  %1554 = vrot.lane.b32.xlu0 %v1052, 95
  %v1555 = vpop.permute.xlu0 %1554
  %1556 = vrot.lane.b32.xlu0 %v1093, 95
  %v1557 = vpop.permute.xlu0 %1556
  %1558 = vrot.lane.b32.xlu0 %v1095, 95
  %v1559 = vpop.permute.xlu0 %1558
  %1560 = vrot.lane.b32.xlu0 %v1136, 95
  %v1561 = vpop.permute.xlu0 %1560
  %vm1562 = vcmask 777216
  %v1563 = vsel %vm1562, %v1545, %v1547
  %v1564 = vsel %vm1562, %v1547, %v1549
  %v1565 = vsel %vm1562, %v1549, %v1551
  %v1566 = vsel %vm1562, %v1551, %v1553
  %v1567 = vsel %vm1562, %v1553, %v1555
  %v1568 = vsel %vm1562, %v1555, %v1557
  %v1569 = vsel %vm1562, %v1557, %v1559
  %v1570 = vsel %vm1562, %v1559, %v1561
  %1579 = vst [vmem:[#allocation2 + $0x200] sm:$0xff] %v1563
  %1580 = vst [vmem:[#allocation2 + $0x208] sm:$0xff] %v1564
  %1581 = vst [vmem:[#allocation2 + $0x210] sm:$0xff] %v1565
  %1582 = vst [vmem:[#allocation2 + $0x218] sm:$0xff] %v1566
  %1583 = vst [vmem:[#allocation2 + $0x220] sm:$0xff] %v1567
  %1584 = vst [vmem:[#allocation2 + $0x228] sm:$0xff] %v1568
  %1585 = vst [vmem:[#allocation2 + $0x230] sm:$0xff] %v1569
  %1586 = vst [vmem:[#allocation2 + $0x238] sm:$0xff] %v1570
  %1587 = vrot.lane.b32.xlu0 %v968, 95
  %v1588 = vpop.permute.xlu0 %1587
  %1589 = vrot.lane.b32.xlu0 %v970, 95
  %v1590 = vpop.permute.xlu0 %1589
  %1591 = vrot.lane.b32.xlu0 %v1011, 95
  %v1592 = vpop.permute.xlu0 %1591
  %1593 = vrot.lane.b32.xlu0 %v1013, 95
  %v1594 = vpop.permute.xlu0 %1593
  %1595 = vrot.lane.b32.xlu0 %v1054, 95
  %v1596 = vpop.permute.xlu0 %1595
  %1597 = vrot.lane.b32.xlu0 %v1056, 95
  %v1598 = vpop.permute.xlu0 %1597
  %1599 = vrot.lane.b32.xlu0 %v1097, 95
  %v1600 = vpop.permute.xlu0 %1599
  %1601 = vrot.lane.b32.xlu0 %v1099, 95
  %v1602 = vpop.permute.xlu0 %1601
  %1603 = vrot.lane.b32.xlu0 %v1139, 95
  %v1604 = vpop.permute.xlu0 %1603
  %v1605 = vsel %vm1562, %v1588, %v1590
  %v1606 = vsel %vm1562, %v1590, %v1592
  %v1607 = vsel %vm1562, %v1592, %v1594
  %v1608 = vsel %vm1562, %v1594, %v1596
  %v1609 = vsel %vm1562, %v1596, %v1598
  %v1610 = vsel %vm1562, %v1598, %v1600
  %v1611 = vsel %vm1562, %v1600, %v1602
  %v1612 = vsel %vm1562, %v1602, %v1604
  %1621 = vst [vmem:[#allocation2 + $0x240] sm:$0xff] %v1605
  %1622 = vst [vmem:[#allocation2 + $0x248] sm:$0xff] %v1606
  %1623 = vst [vmem:[#allocation2 + $0x250] sm:$0xff] %v1607
  %1624 = vst [vmem:[#allocation2 + $0x258] sm:$0xff] %v1608
  %1625 = vst [vmem:[#allocation2 + $0x260] sm:$0xff] %v1609
  %1626 = vst [vmem:[#allocation2 + $0x268] sm:$0xff] %v1610
  %1627 = vst [vmem:[#allocation2 + $0x270] sm:$0xff] %v1611
  %1628 = vst [vmem:[#allocation2 + $0x278] sm:$0xff] %v1612
  %1629 = vrot.lane.b32.xlu0 %v964, 94
  %v1630 = vpop.permute.xlu0 %1629
  %1631 = vrot.lane.b32.xlu0 %v966, 94
  %v1632 = vpop.permute.xlu0 %1631
  %1633 = vrot.lane.b32.xlu0 %v1007, 94
  %v1634 = vpop.permute.xlu0 %1633
  %1635 = vrot.lane.b32.xlu0 %v1009, 94
  %v1636 = vpop.permute.xlu0 %1635
  %1637 = vrot.lane.b32.xlu0 %v1050, 94
  %v1638 = vpop.permute.xlu0 %1637
  %1639 = vrot.lane.b32.xlu0 %v1052, 94
  %v1640 = vpop.permute.xlu0 %1639
  %1641 = vrot.lane.b32.xlu0 %v1093, 94
  %v1642 = vpop.permute.xlu0 %1641
  %1643 = vrot.lane.b32.xlu0 %v1095, 94
  %v1644 = vpop.permute.xlu0 %1643
  %1645 = vrot.lane.b32.xlu0 %v1136, 94
  %v1646 = vpop.permute.xlu0 %1645
  %1647 = vrot.lane.b32.xlu0 %v968, 94
  %v1648 = vpop.permute.xlu0 %1647
  %1649 = vrot.lane.b32.xlu0 %v970, 94
  %v1650 = vpop.permute.xlu0 %1649
  %1651 = vrot.lane.b32.xlu0 %v1011, 94
  %v1652 = vpop.permute.xlu0 %1651
  %1653 = vrot.lane.b32.xlu0 %v1013, 94
  %v1654 = vpop.permute.xlu0 %1653
  %1655 = vrot.lane.b32.xlu0 %v1054, 94
  %v1656 = vpop.permute.xlu0 %1655
  %1657 = vrot.lane.b32.xlu0 %v1056, 94
  %v1658 = vpop.permute.xlu0 %1657
  %1659 = vrot.lane.b32.xlu0 %v1097, 94
  %v1660 = vpop.permute.xlu0 %1659
  %1661 = vrot.lane.b32.xlu0 %v1099, 94
  %v1662 = vpop.permute.xlu0 %1661
  %1663 = vrot.lane.b32.xlu0 %v1139, 94
  %v1664 = vpop.permute.xlu0 %1663
  %vm1665 = vcmask 769024
  %v1666 = vsel %vm1665, %v1630, %v1632
  %v1667 = vsel %vm1665, %v1632, %v1634
  %v1668 = vsel %vm1665, %v1634, %v1636
  %v1669 = vsel %vm1665, %v1636, %v1638
  %v1670 = vsel %vm1665, %v1638, %v1640
  %v1671 = vsel %vm1665, %v1640, %v1642
  %v1672 = vsel %vm1665, %v1642, %v1644
  %v1673 = vsel %vm1665, %v1644, %v1646
  %v1674 = vsel %vm1665, %v1648, %v1650
  %v1675 = vsel %vm1665, %v1650, %v1652
  %v1676 = vsel %vm1665, %v1652, %v1654
  %v1677 = vsel %vm1665, %v1654, %v1656
  %v1678 = vsel %vm1665, %v1656, %v1658
  %v1679 = vsel %vm1665, %v1658, %v1660
  %v1680 = vsel %vm1665, %v1660, %v1662
  %v1681 = vsel %vm1665, %v1662, %v1664
  %v1698 = vsel %vm1334, %v1666, 0.0
  %v1699 = vsel %vm1335, %v1667, 0.0
  %v1700 = vsel %vm1336, %v1668, 0.0
  %v1701 = vsel %vm1337, %v1669, 0.0
  %v1702 = vsel %vm1338, %v1670, 0.0
  %v1703 = vsel %vm1339, %v1671, 0.0
  %v1704 = vsel %vm1340, %v1672, 0.0
  %v1705 = vsel %vm1341, %v1673, 0.0
  %v1706 = vsel %vm1334, %v1674, 0.0
  %v1707 = vsel %vm1335, %v1675, 0.0
  %v1708 = vsel %vm1336, %v1676, 0.0
  %v1709 = vsel %vm1337, %v1677, 0.0
  %v1710 = vsel %vm1338, %v1678, 0.0
  %v1711 = vsel %vm1339, %v1679, 0.0
  %v1712 = vsel %vm1340, %v1680, 0.0
  %v1713 = vsel %vm1341, %v1681, 0.0
  %1714 = vst [vmem:[#allocation2 + $0x280] sm:$0xff] %v1698
  %1715 = vst [vmem:[#allocation2 + $0x288] sm:$0xff] %v1699
  %1716 = vst [vmem:[#allocation2 + $0x290] sm:$0xff] %v1700
  %1717 = vst [vmem:[#allocation2 + $0x298] sm:$0xff] %v1701
  %1718 = vst [vmem:[#allocation2 + $0x2a0] sm:$0xff] %v1702
  %1719 = vst [vmem:[#allocation2 + $0x2a8] sm:$0xff] %v1703
  %1720 = vst [vmem:[#allocation2 + $0x2b0] sm:$0xff] %v1704
  %1721 = vst [vmem:[#allocation2 + $0x2b8] sm:$0xff] %v1705
  %1722 = vst [vmem:[#allocation2 + $0x2c0] sm:$0xff] %v1706
  %1723 = vst [vmem:[#allocation2 + $0x2c8] sm:$0xff] %v1707
  %1724 = vst [vmem:[#allocation2 + $0x2d0] sm:$0xff] %v1708
  %1725 = vst [vmem:[#allocation2 + $0x2d8] sm:$0xff] %v1709
  %1726 = vst [vmem:[#allocation2 + $0x2e0] sm:$0xff] %v1710
  %1727 = vst [vmem:[#allocation2 + $0x2e8] sm:$0xff] %v1711
  %1728 = vst [vmem:[#allocation2 + $0x2f0] sm:$0xff] %v1712
  %1729 = vst [vmem:[#allocation2 + $0x2f8] sm:$0xff] %v1713
  %1730 = vrot.lane.b32.xlu0 %v964, 64
  %v1731 = vpop.permute.xlu0 %1730
  %1732 = vrot.lane.b32.xlu0 %v966, 64
  %v1733 = vpop.permute.xlu0 %1732
  %1734 = vrot.lane.b32.xlu0 %v1007, 64
  %v1735 = vpop.permute.xlu0 %1734
  %1736 = vrot.lane.b32.xlu0 %v1009, 64
  %v1737 = vpop.permute.xlu0 %1736
  %1738 = vrot.lane.b32.xlu0 %v1050, 64
  %v1739 = vpop.permute.xlu0 %1738
  %1740 = vrot.lane.b32.xlu0 %v1052, 64
  %v1741 = vpop.permute.xlu0 %1740
  %1742 = vrot.lane.b32.xlu0 %v1093, 64
  %v1743 = vpop.permute.xlu0 %1742
  %1744 = vrot.lane.b32.xlu0 %v1095, 64
  %v1745 = vpop.permute.xlu0 %1744
  %1746 = vrot.lane.b32.xlu0 %v1136, 64
  %v1747 = vpop.permute.xlu0 %1746
  %1748 = vrot.lane.b32.xlu0 %v968, 64
  %v1749 = vpop.permute.xlu0 %1748
  %1750 = vrot.lane.b32.xlu0 %v970, 64
  %v1751 = vpop.permute.xlu0 %1750
  %1752 = vrot.lane.b32.xlu0 %v1011, 64
  %v1753 = vpop.permute.xlu0 %1752
  %1754 = vrot.lane.b32.xlu0 %v1013, 64
  %v1755 = vpop.permute.xlu0 %1754
  %1756 = vrot.lane.b32.xlu0 %v1054, 64
  %v1757 = vpop.permute.xlu0 %1756
  %1758 = vrot.lane.b32.xlu0 %v1056, 64
  %v1759 = vpop.permute.xlu0 %1758
  %1760 = vrot.lane.b32.xlu0 %v1097, 64
  %v1761 = vpop.permute.xlu0 %1760
  %1762 = vrot.lane.b32.xlu0 %v1099, 64
  %v1763 = vpop.permute.xlu0 %1762
  %1764 = vrot.lane.b32.xlu0 %v1139, 64
  %v1765 = vpop.permute.xlu0 %1764
  %vm1766 = vcmask 523264
  %v1767 = vsel %vm1766, %v1731, %v1733
  %v1768 = vsel %vm1766, %v1733, %v1735
  %v1769 = vsel %vm1766, %v1735, %v1737
  %v1770 = vsel %vm1766, %v1737, %v1739
  %v1771 = vsel %vm1766, %v1739, %v1741
  %v1772 = vsel %vm1766, %v1741, %v1743
  %v1773 = vsel %vm1766, %v1743, %v1745
  %v1774 = vsel %vm1766, %v1745, %v1747
  %v1775 = vsel %vm1766, %v1749, %v1751
  %v1776 = vsel %vm1766, %v1751, %v1753
  %v1777 = vsel %vm1766, %v1753, %v1755
  %v1778 = vsel %vm1766, %v1755, %v1757
  %v1779 = vsel %vm1766, %v1757, %v1759
  %v1780 = vsel %vm1766, %v1759, %v1761
  %v1781 = vsel %vm1766, %v1761, %v1763
  %v1782 = vsel %vm1766, %v1763, %v1765
  %v1799 = vsel %vm1175, %v1767, 0.0
  %v1800 = vsel %vm1176, %v1768, 0.0
  %v1801 = vsel %vm1177, %v1769, 0.0
  %v1802 = vsel %vm1178, %v1770, 0.0
  %v1803 = vsel %vm1179, %v1771, 0.0
  %v1804 = vsel %vm1180, %v1772, 0.0
  %v1805 = vsel %vm1181, %v1773, 0.0
  %v1806 = vsel %vm1182, %v1774, 0.0
  %v1807 = vsel %vm1175, %v1775, 0.0
  %v1808 = vsel %vm1176, %v1776, 0.0
  %v1809 = vsel %vm1177, %v1777, 0.0
  %v1810 = vsel %vm1178, %v1778, 0.0
  %v1811 = vsel %vm1179, %v1779, 0.0
  %v1812 = vsel %vm1180, %v1780, 0.0
  %v1813 = vsel %vm1181, %v1781, 0.0
  %v1814 = vsel %vm1182, %v1782, 0.0
  %1815 = vst [vmem:[#allocation2 + $0x300] sm:$0xff] %v1799
  %1816 = vst [vmem:[#allocation2 + $0x308] sm:$0xff] %v1800
  %1817 = vst [vmem:[#allocation2 + $0x310] sm:$0xff] %v1801
  %1818 = vst [vmem:[#allocation2 + $0x318] sm:$0xff] %v1802
  %1819 = vst [vmem:[#allocation2 + $0x320] sm:$0xff] %v1803
  %1820 = vst [vmem:[#allocation2 + $0x328] sm:$0xff] %v1804
  %1821 = vst [vmem:[#allocation2 + $0x330] sm:$0xff] %v1805
  %1822 = vst [vmem:[#allocation2 + $0x338] sm:$0xff] %v1806
  %1823 = vst [vmem:[#allocation2 + $0x340] sm:$0xff] %v1807
  %1824 = vst [vmem:[#allocation2 + $0x348] sm:$0xff] %v1808
  %1825 = vst [vmem:[#allocation2 + $0x350] sm:$0xff] %v1809
  %1826 = vst [vmem:[#allocation2 + $0x358] sm:$0xff] %v1810
  %1827 = vst [vmem:[#allocation2 + $0x360] sm:$0xff] %v1811
  %1828 = vst [vmem:[#allocation2 + $0x368] sm:$0xff] %v1812
  %1829 = vst [vmem:[#allocation2 + $0x370] sm:$0xff] %v1813
  %1830 = vst [vmem:[#allocation2 + $0x378] sm:$0xff] %v1814
  %1831 = vrot.lane.b32.xlu0 %v964, 63
  %v1832 = vpop.permute.xlu0 %1831
  %1833 = vrot.lane.b32.xlu0 %v966, 63
  %v1834 = vpop.permute.xlu0 %1833
  %1835 = vrot.lane.b32.xlu0 %v1007, 63
  %v1836 = vpop.permute.xlu0 %1835
  %1837 = vrot.lane.b32.xlu0 %v1009, 63
  %v1838 = vpop.permute.xlu0 %1837
  %1839 = vrot.lane.b32.xlu0 %v1050, 63
  %v1840 = vpop.permute.xlu0 %1839
  %1841 = vrot.lane.b32.xlu0 %v1052, 63
  %v1842 = vpop.permute.xlu0 %1841
  %1843 = vrot.lane.b32.xlu0 %v1093, 63
  %v1844 = vpop.permute.xlu0 %1843
  %1845 = vrot.lane.b32.xlu0 %v1095, 63
  %v1846 = vpop.permute.xlu0 %1845
  %1847 = vrot.lane.b32.xlu0 %v1136, 63
  %v1848 = vpop.permute.xlu0 %1847
  %vm1849 = vcmask 515072
  %v1850 = vsel %vm1849, %v1832, %v1834
  %v1851 = vsel %vm1849, %v1834, %v1836
  %v1852 = vsel %vm1849, %v1836, %v1838
  %v1853 = vsel %vm1849, %v1838, %v1840
  %v1854 = vsel %vm1849, %v1840, %v1842
  %v1855 = vsel %vm1849, %v1842, %v1844
  %v1856 = vsel %vm1849, %v1844, %v1846
  %v1857 = vsel %vm1849, %v1846, %v1848
  %1866 = vst [vmem:[#allocation2 + $0x380] sm:$0xff] %v1850
  %1867 = vst [vmem:[#allocation2 + $0x388] sm:$0xff] %v1851
  %1868 = vst [vmem:[#allocation2 + $0x390] sm:$0xff] %v1852
  %1869 = vst [vmem:[#allocation2 + $0x398] sm:$0xff] %v1853
  %1870 = vst [vmem:[#allocation2 + $0x3a0] sm:$0xff] %v1854
  %1871 = vst [vmem:[#allocation2 + $0x3a8] sm:$0xff] %v1855
  %1872 = vst [vmem:[#allocation2 + $0x3b0] sm:$0xff] %v1856
  %1873 = vst [vmem:[#allocation2 + $0x3b8] sm:$0xff] %v1857
  %1874 = vrot.lane.b32.xlu0 %v968, 63
  %v1875 = vpop.permute.xlu0 %1874
  %1876 = vrot.lane.b32.xlu0 %v970, 63
  %v1877 = vpop.permute.xlu0 %1876
  %1878 = vrot.lane.b32.xlu0 %v1011, 63
  %v1879 = vpop.permute.xlu0 %1878
  %1880 = vrot.lane.b32.xlu0 %v1013, 63
  %v1881 = vpop.permute.xlu0 %1880
  %1882 = vrot.lane.b32.xlu0 %v1054, 63
  %v1883 = vpop.permute.xlu0 %1882
  %1884 = vrot.lane.b32.xlu0 %v1056, 63
  %v1885 = vpop.permute.xlu0 %1884
  %1886 = vrot.lane.b32.xlu0 %v1097, 63
  %v1887 = vpop.permute.xlu0 %1886
  %1888 = vrot.lane.b32.xlu0 %v1099, 63
  %v1889 = vpop.permute.xlu0 %1888
  %1890 = vrot.lane.b32.xlu0 %v1139, 63
  %v1891 = vpop.permute.xlu0 %1890
  %v1892 = vsel %vm1849, %v1875, %v1877
  %v1893 = vsel %vm1849, %v1877, %v1879
  %v1894 = vsel %vm1849, %v1879, %v1881
  %v1895 = vsel %vm1849, %v1881, %v1883
  %v1896 = vsel %vm1849, %v1883, %v1885
  %v1897 = vsel %vm1849, %v1885, %v1887
  %v1898 = vsel %vm1849, %v1887, %v1889
  %v1899 = vsel %vm1849, %v1889, %v1891
  %1908 = vst [vmem:[#allocation2 + $0x3c0] sm:$0xff] %v1892
  %1909 = vst [vmem:[#allocation2 + $0x3c8] sm:$0xff] %v1893
  %1910 = vst [vmem:[#allocation2 + $0x3d0] sm:$0xff] %v1894
  %1911 = vst [vmem:[#allocation2 + $0x3d8] sm:$0xff] %v1895
  %1912 = vst [vmem:[#allocation2 + $0x3e0] sm:$0xff] %v1896
  %1913 = vst [vmem:[#allocation2 + $0x3e8] sm:$0xff] %v1897
  %1914 = vst [vmem:[#allocation2 + $0x3f0] sm:$0xff] %v1898
  %1915 = vst [vmem:[#allocation2 + $0x3f8] sm:$0xff] %v1899
  %1916 = vrot.lane.b32.xlu0 %v964, 62
  %v1917 = vpop.permute.xlu0 %1916
  %1918 = vrot.lane.b32.xlu0 %v966, 62
  %v1919 = vpop.permute.xlu0 %1918
  %1920 = vrot.lane.b32.xlu0 %v1007, 62
  %v1921 = vpop.permute.xlu0 %1920
  %1922 = vrot.lane.b32.xlu0 %v1009, 62
  %v1923 = vpop.permute.xlu0 %1922
  %1924 = vrot.lane.b32.xlu0 %v1050, 62
  %v1925 = vpop.permute.xlu0 %1924
  %1926 = vrot.lane.b32.xlu0 %v1052, 62
  %v1927 = vpop.permute.xlu0 %1926
  %1928 = vrot.lane.b32.xlu0 %v1093, 62
  %v1929 = vpop.permute.xlu0 %1928
  %1930 = vrot.lane.b32.xlu0 %v1095, 62
  %v1931 = vpop.permute.xlu0 %1930
  %1932 = vrot.lane.b32.xlu0 %v1136, 62
  %v1933 = vpop.permute.xlu0 %1932
  %1934 = vrot.lane.b32.xlu0 %v968, 62
  %v1935 = vpop.permute.xlu0 %1934
  %1936 = vrot.lane.b32.xlu0 %v970, 62
  %v1937 = vpop.permute.xlu0 %1936
  %1938 = vrot.lane.b32.xlu0 %v1011, 62
  %v1939 = vpop.permute.xlu0 %1938
  %1940 = vrot.lane.b32.xlu0 %v1013, 62
  %v1941 = vpop.permute.xlu0 %1940
  %1942 = vrot.lane.b32.xlu0 %v1054, 62
  %v1943 = vpop.permute.xlu0 %1942
  %1944 = vrot.lane.b32.xlu0 %v1056, 62
  %v1945 = vpop.permute.xlu0 %1944
  %1946 = vrot.lane.b32.xlu0 %v1097, 62
  %v1947 = vpop.permute.xlu0 %1946
  %1948 = vrot.lane.b32.xlu0 %v1099, 62
  %v1949 = vpop.permute.xlu0 %1948
  %1950 = vrot.lane.b32.xlu0 %v1139, 62
  %v1951 = vpop.permute.xlu0 %1950
  %vm1952 = vcmask 506880
  %v1953 = vsel %vm1952, %v1917, %v1919
  %v1954 = vsel %vm1952, %v1919, %v1921
  %v1955 = vsel %vm1952, %v1921, %v1923
  %v1956 = vsel %vm1952, %v1923, %v1925
  %v1957 = vsel %vm1952, %v1925, %v1927
  %v1958 = vsel %vm1952, %v1927, %v1929
  %v1959 = vsel %vm1952, %v1929, %v1931
  %v1960 = vsel %vm1952, %v1931, %v1933
  %v1961 = vsel %vm1952, %v1935, %v1937
  %v1962 = vsel %vm1952, %v1937, %v1939
  %v1963 = vsel %vm1952, %v1939, %v1941
  %v1964 = vsel %vm1952, %v1941, %v1943
  %v1965 = vsel %vm1952, %v1943, %v1945
  %v1966 = vsel %vm1952, %v1945, %v1947
  %v1967 = vsel %vm1952, %v1947, %v1949
  %v1968 = vsel %vm1952, %v1949, %v1951
  %v1985 = vsel %vm1334, %v1953, 0.0
  %v1986 = vsel %vm1335, %v1954, 0.0
  %v1987 = vsel %vm1336, %v1955, 0.0
  %v1988 = vsel %vm1337, %v1956, 0.0
  %v1989 = vsel %vm1338, %v1957, 0.0
  %v1990 = vsel %vm1339, %v1958, 0.0
  %v1991 = vsel %vm1340, %v1959, 0.0
  %v1992 = vsel %vm1341, %v1960, 0.0
  %v1993 = vsel %vm1334, %v1961, 0.0
  %v1994 = vsel %vm1335, %v1962, 0.0
  %v1995 = vsel %vm1336, %v1963, 0.0
  %v1996 = vsel %vm1337, %v1964, 0.0
  %v1997 = vsel %vm1338, %v1965, 0.0
  %v1998 = vsel %vm1339, %v1966, 0.0
  %v1999 = vsel %vm1340, %v1967, 0.0
  %v2000 = vsel %vm1341, %v1968, 0.0
  %2001 = vst [vmem:[#allocation2 + $0x400] sm:$0xff] %v1985
  %2002 = vst [vmem:[#allocation2 + $0x408] sm:$0xff] %v1986
  %2003 = vst [vmem:[#allocation2 + $0x410] sm:$0xff] %v1987
  %2004 = vst [vmem:[#allocation2 + $0x418] sm:$0xff] %v1988
  %2005 = vst [vmem:[#allocation2 + $0x420] sm:$0xff] %v1989
  %2006 = vst [vmem:[#allocation2 + $0x428] sm:$0xff] %v1990
  %2007 = vst [vmem:[#allocation2 + $0x430] sm:$0xff] %v1991
  %2008 = vst [vmem:[#allocation2 + $0x438] sm:$0xff] %v1992
  %2009 = vst [vmem:[#allocation2 + $0x440] sm:$0xff] %v1993
  %2010 = vst [vmem:[#allocation2 + $0x448] sm:$0xff] %v1994
  %2011 = vst [vmem:[#allocation2 + $0x450] sm:$0xff] %v1995
  %2012 = vst [vmem:[#allocation2 + $0x458] sm:$0xff] %v1996
  %2013 = vst [vmem:[#allocation2 + $0x460] sm:$0xff] %v1997
  %2014 = vst [vmem:[#allocation2 + $0x468] sm:$0xff] %v1998
  %2015 = vst [vmem:[#allocation2 + $0x470] sm:$0xff] %v1999
  %2016 = vst [vmem:[#allocation2 + $0x478] sm:$0xff] %v2000
  %v2017 = vld [vmem:[%s2] sm:$0xf]
  %v2018 = vld [vmem:[#allocation2] sm:$0xff]
  %v2019 = vld [vmem:[#allocation2 + $0x8] sm:$0xff]
  %v2020 = vld [vmem:[#allocation2 + $0x10] sm:$0xff]
  %v2021 = vld [vmem:[#allocation2 + $0x18] sm:$0xff]
  %v2022 = vld [vmem:[#allocation2 + $0x20] sm:$0xff]
  %v2023 = vld [vmem:[#allocation2 + $0x28] sm:$0xff]
  %v2024 = vld [vmem:[#allocation2 + $0x30] sm:$0xff]
  %v2025 = vld [vmem:[#allocation2 + $0x38] sm:$0xff]
  %v2026 = vld [vmem:[#allocation2 + $0x40] sm:$0xff]
  %v2027 = vld [vmem:[#allocation2 + $0x48] sm:$0xff]
  %v2028 = vld [vmem:[#allocation2 + $0x50] sm:$0xff]
  %v2029 = vld [vmem:[#allocation2 + $0x58] sm:$0xff]
  %v2030 = vld [vmem:[#allocation2 + $0x60] sm:$0xff]
  %v2031 = vld [vmem:[#allocation2 + $0x68] sm:$0xff]
  %v2032 = vld [vmem:[#allocation2 + $0x70] sm:$0xff]
  %v2033 = vld [vmem:[#allocation2 + $0x78] sm:$0xff]
  %v2034 = vld [vmem:[#allocation2 + $0x80] sm:$0xff]
  %v2035 = vld [vmem:[#allocation2 + $0x88] sm:$0xff]
  %v2036 = vld [vmem:[#allocation2 + $0x90] sm:$0xff]
  %v2037 = vld [vmem:[#allocation2 + $0x98] sm:$0xff]
  %v2038 = vld [vmem:[#allocation2 + $0xa0] sm:$0xff]
  %v2039 = vld [vmem:[#allocation2 + $0xa8] sm:$0xff]
  %v2040 = vld [vmem:[#allocation2 + $0xb0] sm:$0xff]
  %v2041 = vld [vmem:[#allocation2 + $0xb8] sm:$0xff]
  %v2042 = vld [vmem:[#allocation2 + $0xc0] sm:$0xff]
  %v2043 = vld [vmem:[#allocation2 + $0xc8] sm:$0xff]
  %v2044 = vld [vmem:[#allocation2 + $0xd0] sm:$0xff]
  %v2045 = vld [vmem:[#allocation2 + $0xd8] sm:$0xff]
  %v2046 = vld [vmem:[#allocation2 + $0xe0] sm:$0xff]
  %v2047 = vld [vmem:[#allocation2 + $0xe8] sm:$0xff]
  %v2048 = vld [vmem:[#allocation2 + $0xf0] sm:$0xff]
  %v2049 = vld [vmem:[#allocation2 + $0xf8] sm:$0xff]
  %v2050 = vld [vmem:[#allocation2 + $0x100] sm:$0xff]
  %v2051 = vld [vmem:[#allocation2 + $0x108] sm:$0xff]
  %v2052 = vld [vmem:[#allocation2 + $0x110] sm:$0xff]
  %v2053 = vld [vmem:[#allocation2 + $0x118] sm:$0xff]
  %v2054 = vld [vmem:[#allocation2 + $0x120] sm:$0xff]
  %v2055 = vld [vmem:[#allocation2 + $0x128] sm:$0xff]
  %v2056 = vld [vmem:[#allocation2 + $0x130] sm:$0xff]
  %v2057 = vld [vmem:[#allocation2 + $0x138] sm:$0xff]
  %v2058 = vld [vmem:[#allocation2 + $0x140] sm:$0xff]
  %v2059 = vld [vmem:[#allocation2 + $0x148] sm:$0xff]
  %v2060 = vld [vmem:[#allocation2 + $0x150] sm:$0xff]
  %v2061 = vld [vmem:[#allocation2 + $0x158] sm:$0xff]
  %v2062 = vld [vmem:[#allocation2 + $0x160] sm:$0xff]
  %v2063 = vld [vmem:[#allocation2 + $0x168] sm:$0xff]
  %v2064 = vld [vmem:[#allocation2 + $0x170] sm:$0xff]
  %v2065 = vld [vmem:[#allocation2 + $0x178] sm:$0xff]
  %v2066 = vld [vmem:[#allocation2 + $0x180] sm:$0xff]
  %v2067 = vld [vmem:[#allocation2 + $0x188] sm:$0xff]
  %v2068 = vld [vmem:[#allocation2 + $0x190] sm:$0xff]
  %v2069 = vld [vmem:[#allocation2 + $0x198] sm:$0xff]
  %v2070 = vld [vmem:[#allocation2 + $0x1a0] sm:$0xff]
  %v2071 = vld [vmem:[#allocation2 + $0x1a8] sm:$0xff]
  %v2072 = vld [vmem:[#allocation2 + $0x1b0] sm:$0xff]
  %v2073 = vld [vmem:[#allocation2 + $0x1b8] sm:$0xff]
  %v2074 = vld [vmem:[#allocation2 + $0x1c0] sm:$0xff]
  %v2075 = vld [vmem:[#allocation2 + $0x1c8] sm:$0xff]
  %v2076 = vld [vmem:[#allocation2 + $0x1d0] sm:$0xff]
  %v2077 = vld [vmem:[#allocation2 + $0x1d8] sm:$0xff]
  %v2078 = vld [vmem:[#allocation2 + $0x1e0] sm:$0xff]
  %v2079 = vld [vmem:[#allocation2 + $0x1e8] sm:$0xff]
  %v2080 = vld [vmem:[#allocation2 + $0x1f0] sm:$0xff]
  %v2081 = vld [vmem:[#allocation2 + $0x1f8] sm:$0xff]
  %v2082 = vld [vmem:[#allocation2 + $0x200] sm:$0xff]
  %v2083 = vld [vmem:[#allocation2 + $0x208] sm:$0xff]
  %v2084 = vld [vmem:[#allocation2 + $0x210] sm:$0xff]
  %v2085 = vld [vmem:[#allocation2 + $0x218] sm:$0xff]
  %v2086 = vld [vmem:[#allocation2 + $0x220] sm:$0xff]
  %v2087 = vld [vmem:[#allocation2 + $0x228] sm:$0xff]
  %v2088 = vld [vmem:[#allocation2 + $0x230] sm:$0xff]
  %v2089 = vld [vmem:[#allocation2 + $0x238] sm:$0xff]
  %v2090 = vld [vmem:[#allocation2 + $0x240] sm:$0xff]
  %v2091 = vld [vmem:[#allocation2 + $0x248] sm:$0xff]
  %v2092 = vld [vmem:[#allocation2 + $0x250] sm:$0xff]
  %v2093 = vld [vmem:[#allocation2 + $0x258] sm:$0xff]
  %v2094 = vld [vmem:[#allocation2 + $0x260] sm:$0xff]
  %v2095 = vld [vmem:[#allocation2 + $0x268] sm:$0xff]
  %v2096 = vld [vmem:[#allocation2 + $0x270] sm:$0xff]
  %v2097 = vld [vmem:[#allocation2 + $0x278] sm:$0xff]
  %v2098 = vld [vmem:[#allocation2 + $0x280] sm:$0xff]
  %v2099 = vld [vmem:[#allocation2 + $0x288] sm:$0xff]
  %v2100 = vld [vmem:[#allocation2 + $0x290] sm:$0xff]
  %v2101 = vld [vmem:[#allocation2 + $0x298] sm:$0xff]
  %v2102 = vld [vmem:[#allocation2 + $0x2a0] sm:$0xff]
  %v2103 = vld [vmem:[#allocation2 + $0x2a8] sm:$0xff]
  %v2104 = vld [vmem:[#allocation2 + $0x2b0] sm:$0xff]
  %v2105 = vld [vmem:[#allocation2 + $0x2b8] sm:$0xff]
  %v2106 = vld [vmem:[#allocation2 + $0x2c0] sm:$0xff]
  %v2107 = vld [vmem:[#allocation2 + $0x2c8] sm:$0xff]
  %v2108 = vld [vmem:[#allocation2 + $0x2d0] sm:$0xff]
  %v2109 = vld [vmem:[#allocation2 + $0x2d8] sm:$0xff]
  %v2110 = vld [vmem:[#allocation2 + $0x2e0] sm:$0xff]
  %v2111 = vld [vmem:[#allocation2 + $0x2e8] sm:$0xff]
  %v2112 = vld [vmem:[#allocation2 + $0x2f0] sm:$0xff]
  %v2113 = vld [vmem:[#allocation2 + $0x2f8] sm:$0xff]
  %v2114 = vld [vmem:[#allocation2 + $0x300] sm:$0xff]
  %v2115 = vld [vmem:[#allocation2 + $0x308] sm:$0xff]
  %v2116 = vld [vmem:[#allocation2 + $0x310] sm:$0xff]
  %v2117 = vld [vmem:[#allocation2 + $0x318] sm:$0xff]
  %v2118 = vld [vmem:[#allocation2 + $0x320] sm:$0xff]
  %v2119 = vld [vmem:[#allocation2 + $0x328] sm:$0xff]
  %v2120 = vld [vmem:[#allocation2 + $0x330] sm:$0xff]
  %v2121 = vld [vmem:[#allocation2 + $0x338] sm:$0xff]
  %v2122 = vld [vmem:[#allocation2 + $0x340] sm:$0xff]
  %v2123 = vld [vmem:[#allocation2 + $0x348] sm:$0xff]
  %v2124 = vld [vmem:[#allocation2 + $0x350] sm:$0xff]
  %v2125 = vld [vmem:[#allocation2 + $0x358] sm:$0xff]
  %v2126 = vld [vmem:[#allocation2 + $0x360] sm:$0xff]
  %v2127 = vld [vmem:[#allocation2 + $0x368] sm:$0xff]
  %v2128 = vld [vmem:[#allocation2 + $0x370] sm:$0xff]
  %v2129 = vld [vmem:[#allocation2 + $0x378] sm:$0xff]
  %v2130 = vld [vmem:[#allocation2 + $0x380] sm:$0xff]
  %v2131 = vld [vmem:[#allocation2 + $0x388] sm:$0xff]
  %v2132 = vld [vmem:[#allocation2 + $0x390] sm:$0xff]
  %v2133 = vld [vmem:[#allocation2 + $0x398] sm:$0xff]
  %v2134 = vld [vmem:[#allocation2 + $0x3a0] sm:$0xff]
  %v2135 = vld [vmem:[#allocation2 + $0x3a8] sm:$0xff]
  %v2136 = vld [vmem:[#allocation2 + $0x3b0] sm:$0xff]
  %v2137 = vld [vmem:[#allocation2 + $0x3b8] sm:$0xff]
  %v2138 = vld [vmem:[#allocation2 + $0x3c0] sm:$0xff]
  %v2139 = vld [vmem:[#allocation2 + $0x3c8] sm:$0xff]
  %v2140 = vld [vmem:[#allocation2 + $0x3d0] sm:$0xff]
  %v2141 = vld [vmem:[#allocation2 + $0x3d8] sm:$0xff]
  %v2142 = vld [vmem:[#allocation2 + $0x3e0] sm:$0xff]
  %v2143 = vld [vmem:[#allocation2 + $0x3e8] sm:$0xff]
  %v2144 = vld [vmem:[#allocation2 + $0x3f0] sm:$0xff]
  %v2145 = vld [vmem:[#allocation2 + $0x3f8] sm:$0xff]
  %v2146 = vld [vmem:[#allocation2 + $0x400] sm:$0xff]
  %v2147 = vld [vmem:[#allocation2 + $0x408] sm:$0xff]
  %v2148 = vld [vmem:[#allocation2 + $0x410] sm:$0xff]
  %v2149 = vld [vmem:[#allocation2 + $0x418] sm:$0xff]
  %v2150 = vld [vmem:[#allocation2 + $0x420] sm:$0xff]
  %v2151 = vld [vmem:[#allocation2 + $0x428] sm:$0xff]
  %v2152 = vld [vmem:[#allocation2 + $0x430] sm:$0xff]
  %v2153 = vld [vmem:[#allocation2 + $0x438] sm:$0xff]
  %v2154 = vld [vmem:[#allocation2 + $0x440] sm:$0xff]
  %v2155 = vld [vmem:[#allocation2 + $0x448] sm:$0xff]
  %v2156 = vld [vmem:[#allocation2 + $0x450] sm:$0xff]
  %v2157 = vld [vmem:[#allocation2 + $0x458] sm:$0xff]
  %v2158 = vld [vmem:[#allocation2 + $0x460] sm:$0xff]
  %v2159 = vld [vmem:[#allocation2 + $0x468] sm:$0xff]
  %v2160 = vld [vmem:[#allocation2 + $0x470] sm:$0xff]
  %v2161 = vld [vmem:[#allocation2 + $0x478] sm:$0xff]
  %v2162 = vpack.c.bf16 %v2034, %v2018
  %v2163 = vpack.c.bf16 %v2035, %v2019
  %v2164 = vpack.c.bf16 %v2036, %v2020
  %v2165 = vpack.c.bf16 %v2037, %v2021
  %v2166 = vpack.c.bf16 %v2038, %v2022
  %v2167 = vpack.c.bf16 %v2039, %v2023
  %v2168 = vpack.c.bf16 %v2040, %v2024
  %v2169 = vpack.c.bf16 %v2041, %v2025
  %v2170 = vpack.c.bf16 %v2042, %v2026
  %v2171 = vpack.c.bf16 %v2043, %v2027
  %v2172 = vpack.c.bf16 %v2044, %v2028
  %v2173 = vpack.c.bf16 %v2045, %v2029
  %v2174 = vpack.c.bf16 %v2046, %v2030
  %v2175 = vpack.c.bf16 %v2047, %v2031
  %v2176 = vpack.c.bf16 %v2048, %v2032
  %v2177 = vpack.c.bf16 %v2049, %v2033
  %v2178 = vpack.c.bf16 %v2066, %v2050
  %v2179 = vpack.c.bf16 %v2067, %v2051
  %v2180 = vpack.c.bf16 %v2068, %v2052
  %v2181 = vpack.c.bf16 %v2069, %v2053
  %v2182 = vpack.c.bf16 %v2070, %v2054
  %v2183 = vpack.c.bf16 %v2071, %v2055
  %v2184 = vpack.c.bf16 %v2072, %v2056
  %v2185 = vpack.c.bf16 %v2073, %v2057
  %v2186 = vpack.c.bf16 %v2074, %v2058
  %v2187 = vpack.c.bf16 %v2075, %v2059
  %v2188 = vpack.c.bf16 %v2076, %v2060
  %v2189 = vpack.c.bf16 %v2077, %v2061
  %v2190 = vpack.c.bf16 %v2078, %v2062
  %v2191 = vpack.c.bf16 %v2079, %v2063
  %v2192 = vpack.c.bf16 %v2080, %v2064
  %v2193 = vpack.c.bf16 %v2081, %v2065
  %v2194 = vpack.c.bf16 %v2098, %v2082
  %v2195 = vpack.c.bf16 %v2099, %v2083
  %v2196 = vpack.c.bf16 %v2100, %v2084
  %v2197 = vpack.c.bf16 %v2101, %v2085
  %v2198 = vpack.c.bf16 %v2102, %v2086
  %v2199 = vpack.c.bf16 %v2103, %v2087
  %v2200 = vpack.c.bf16 %v2104, %v2088
  %v2201 = vpack.c.bf16 %v2105, %v2089
  %v2202 = vpack.c.bf16 %v2106, %v2090
  %v2203 = vpack.c.bf16 %v2107, %v2091
  %v2204 = vpack.c.bf16 %v2108, %v2092
  %v2205 = vpack.c.bf16 %v2109, %v2093
  %v2206 = vpack.c.bf16 %v2110, %v2094
  %v2207 = vpack.c.bf16 %v2111, %v2095
  %v2208 = vpack.c.bf16 %v2112, %v2096
  %v2209 = vpack.c.bf16 %v2113, %v2097
  %v2210 = vpack.c.bf16 %v2130, %v2114
  %v2211 = vpack.c.bf16 %v2131, %v2115
  %v2212 = vpack.c.bf16 %v2132, %v2116
  %v2213 = vpack.c.bf16 %v2133, %v2117
  %v2214 = vpack.c.bf16 %v2134, %v2118
  %v2215 = vpack.c.bf16 %v2135, %v2119
  %v2216 = vpack.c.bf16 %v2136, %v2120
  %v2217 = vpack.c.bf16 %v2137, %v2121
  %v2218 = vpack.c.bf16 %v2138, %v2122
  %v2219 = vpack.c.bf16 %v2139, %v2123
  %v2220 = vpack.c.bf16 %v2140, %v2124
  %v2221 = vpack.c.bf16 %v2141, %v2125
  %v2222 = vpack.c.bf16 %v2142, %v2126
  %v2223 = vpack.c.bf16 %v2143, %v2127
  %v2224 = vpack.c.bf16 %v2144, %v2128
  %v2225 = vpack.c.bf16 %v2145, %v2129
  %v2226 = vpack.c.bf16 %v2146, %v2146
  %v2227 = vpack.c.bf16 %v2147, %v2147
  %v2228 = vpack.c.bf16 %v2148, %v2148
  %v2229 = vpack.c.bf16 %v2149, %v2149
  %v2230 = vpack.c.bf16 %v2150, %v2150
  %v2231 = vpack.c.bf16 %v2151, %v2151
  %v2232 = vpack.c.bf16 %v2152, %v2152
  %v2233 = vpack.c.bf16 %v2153, %v2153
  %v2234 = vpack.c.bf16 %v2154, %v2154
  %v2235 = vpack.c.bf16 %v2155, %v2155
  %v2236 = vpack.c.bf16 %v2156, %v2156
  %v2237 = vpack.c.bf16 %v2157, %v2157
  %v2238 = vpack.c.bf16 %v2158, %v2158
  %v2239 = vpack.c.bf16 %v2159, %v2159
  %v2240 = vpack.c.bf16 %v2160, %v2160
  %v2241 = vpack.c.bf16 %v2161, %v2161
  %vm2242 = vcmask 588800
  %v2244 = vsel %vm2242, %v2017, 0
  %vm2246 = vcmask 1043456
  %v2248 = vsel %vm2246, %v2226, 0
  %v2251 = vsel %vm2246, %v2227, 0
  %v2254 = vsel %vm2246, %v2228, 0
  %v2257 = vsel %vm2246, %v2229, 0
  %v2260 = vsel %vm2246, %v2230, 0
  %v2263 = vsel %vm2246, %v2231, 0
  %v2266 = vsel %vm2246, %v2232, 0
  %v2269 = vsel %vm2246, %v2233, 0
  %v2272 = vsel %vm2246, %v2234, 0
  %v2275 = vsel %vm2246, %v2235, 0
  %v2278 = vsel %vm2246, %v2236, 0
  %v2281 = vsel %vm2246, %v2237, 0
  %v2284 = vsel %vm2246, %v2238, 0
  %v2287 = vsel %vm2246, %v2239, 0
  %v2290 = vsel %vm2246, %v2240, 0
  %v2293 = vsel %vm2246, %v2241, 0
  %2295 = vmatprep.subr.bf16.mxu0 %v2163
  %2296 = vmatpush1.bf16.msra.mxu0 %v2162
  %2297 = vmatprep.subr.bf16.mxu0 %v2179
  %2298 = vmatpush1.bf16.msra.mxu0 %v2178
  %2299 = vmatprep.subr.bf16.mxu0 %v2195
  %2300 = vmatpush1.bf16.msra.mxu0 %v2194
  %2301 = vmatprep.subr.bf16.mxu0 %v2211
  %2302 = vmatpush1.bf16.msra.mxu0 %v2210
  %2303 = vmatprep.subr.bf16.mxu0 %v2251
  %2304 = vmatpush1.bf16.msra.mxu0 %v2248
  %2305 = vmatprep.subr.bf16.mxu0 0
  %2306 = vmatpush1.bf16.msra.mxu0 0
  %2307 = vmatprep.subr.bf16.mxu0 0
  %2308 = vmatpush1.bf16.msra.mxu0 0
  %2309 = vmatprep.subr.bf16.mxu0 0
  %2310 = vmatpush1.bf16.msra.mxu0 0
  %2311 = vmatprep.subr.bf16.mxu0 0
  %2312 = vmatpush1.bf16.msra.mxu0 0
  %2313 = vmatprep.subr.bf16.mxu0 0
  %2314 = vmatpush1.bf16.msra.mxu0 0
  %2315 = vmatprep.subr.bf16.mxu0 0
  %2316 = vmatpush1.bf16.msra.mxu0 0
  %2317 = vmatprep.subr.bf16.mxu0 0
  %2318 = vmatpush1.bf16.msra.mxu0 0
  %2319 = vmatprep.subr.bf16.mxu0 0
  %2320 = vmatpush1.bf16.msra.mxu0 0
  %2321 = vmatprep.subr.bf16.mxu0 0
  %2322 = vmatpush1.bf16.msra.mxu0 0
  %2323 = vmatprep.subr.bf16.mxu0 0
  %2324 = vmatpush1.bf16.msra.mxu0 0
  %2325 = vmatprep.subr.bf16.mxu0 0
  %2326 = vmatpush1.bf16.msra.mxu0 0
  %2327 = vmatprep.mubr.bf16.mxu0 0
  %2328 = vmatmul.mubr.bf16.gmra.mrb[0].mxu0 %v2244
  %v2329 = vpop.f32.mrb[0].mxu0
  %v2330 = vadd.f32 0.0, %v2329
  %v2331 = vpop.f32.mrb[0].mxu0
  %v2332 = vadd.f32 0.0, %v2331
  %v2333 = vpop.f32.mrb[0].mxu0
  %v2334 = vpop.f32.mrb[0].mxu0
  %2335 = vdwg.mxu0
  %2336 = vmatprep.subr.bf16.mxu0 %v2165
  %2337 = vmatpush1.bf16.msra.mxu0 %v2164
  %2338 = vmatprep.subr.bf16.mxu0 %v2181
  %2339 = vmatpush1.bf16.msra.mxu0 %v2180
  %2340 = vmatprep.subr.bf16.mxu0 %v2197
  %2341 = vmatpush1.bf16.msra.mxu0 %v2196
  %2342 = vmatprep.subr.bf16.mxu0 %v2213
  %2343 = vmatpush1.bf16.msra.mxu0 %v2212
  %2344 = vmatprep.subr.bf16.mxu0 %v2257
  %2345 = vmatpush1.bf16.msra.mxu0 %v2254
  %2346 = vmatprep.subr.bf16.mxu0 0
  %2347 = vmatpush1.bf16.msra.mxu0 0
  %2348 = vmatprep.subr.bf16.mxu0 0
  %2349 = vmatpush1.bf16.msra.mxu0 0
  %2350 = vmatprep.subr.bf16.mxu0 0
  %2351 = vmatpush1.bf16.msra.mxu0 0
  %2352 = vmatprep.subr.bf16.mxu0 0
  %2353 = vmatpush1.bf16.msra.mxu0 0
  %2354 = vmatprep.subr.bf16.mxu0 0
  %2355 = vmatpush1.bf16.msra.mxu0 0
  %2356 = vmatprep.subr.bf16.mxu0 0
  %2357 = vmatpush1.bf16.msra.mxu0 0
  %2358 = vmatprep.subr.bf16.mxu0 0
  %2359 = vmatpush1.bf16.msra.mxu0 0
  %2360 = vmatprep.subr.bf16.mxu0 0
  %2361 = vmatpush1.bf16.msra.mxu0 0
  %2362 = vmatprep.subr.bf16.mxu0 0
  %2363 = vmatpush1.bf16.msra.mxu0 0
  %2364 = vmatprep.subr.bf16.mxu0 0
  %2365 = vmatpush1.bf16.msra.mxu0 0
  %2366 = vmatprep.subr.bf16.mxu0 0
  %2367 = vmatpush1.bf16.msra.mxu0 0
  %2368 = vmatprep.mubr.bf16.mxu0 0
  %2369 = vmatmul.mubr.bf16.gmra.mrb[0].mxu0 %v2244
  %v2370 = vpop.f32.mrb[0].mxu0
  %v2371 = vadd.f32 0.0, %v2370
  %v2372 = vpop.f32.mrb[0].mxu0
  %v2373 = vadd.f32 0.0, %v2372
  %v2374 = vpop.f32.mrb[0].mxu0
  %v2375 = vpop.f32.mrb[0].mxu0
  %2376 = vdwg.mxu0
  %2377 = vmatprep.subr.bf16.mxu0 %v2167
  %2378 = vmatpush1.bf16.msra.mxu0 %v2166
  %2379 = vmatprep.subr.bf16.mxu0 %v2183
  %2380 = vmatpush1.bf16.msra.mxu0 %v2182
  %2381 = vmatprep.subr.bf16.mxu0 %v2199
  %2382 = vmatpush1.bf16.msra.mxu0 %v2198
  %2383 = vmatprep.subr.bf16.mxu0 %v2215
  %2384 = vmatpush1.bf16.msra.mxu0 %v2214
  %2385 = vmatprep.subr.bf16.mxu0 %v2263
  %2386 = vmatpush1.bf16.msra.mxu0 %v2260
  %2387 = vmatprep.subr.bf16.mxu0 0
  %2388 = vmatpush1.bf16.msra.mxu0 0
  %2389 = vmatprep.subr.bf16.mxu0 0
  %2390 = vmatpush1.bf16.msra.mxu0 0
  %2391 = vmatprep.subr.bf16.mxu0 0
  %2392 = vmatpush1.bf16.msra.mxu0 0
  %2393 = vmatprep.subr.bf16.mxu0 0
  %2394 = vmatpush1.bf16.msra.mxu0 0
  %2395 = vmatprep.subr.bf16.mxu0 0
  %2396 = vmatpush1.bf16.msra.mxu0 0
  %2397 = vmatprep.subr.bf16.mxu0 0
  %2398 = vmatpush1.bf16.msra.mxu0 0
  %2399 = vmatprep.subr.bf16.mxu0 0
  %2400 = vmatpush1.bf16.msra.mxu0 0
  %2401 = vmatprep.subr.bf16.mxu0 0
  %2402 = vmatpush1.bf16.msra.mxu0 0
  %2403 = vmatprep.subr.bf16.mxu0 0
  %2404 = vmatpush1.bf16.msra.mxu0 0
  %2405 = vmatprep.subr.bf16.mxu0 0
  %2406 = vmatpush1.bf16.msra.mxu0 0
  %2407 = vmatprep.subr.bf16.mxu0 0
  %2408 = vmatpush1.bf16.msra.mxu0 0
  %2409 = vmatprep.mubr.bf16.mxu0 0
  %2410 = vmatmul.mubr.bf16.gmra.mrb[0].mxu0 %v2244
  %v2411 = vpop.f32.mrb[0].mxu0
  %v2412 = vadd.f32 0.0, %v2411
  %v2413 = vpop.f32.mrb[0].mxu0
  %v2414 = vadd.f32 0.0, %v2413
  %v2415 = vpop.f32.mrb[0].mxu0
  %v2416 = vpop.f32.mrb[0].mxu0
  %2417 = vdwg.mxu0
  %2418 = vmatprep.subr.bf16.mxu0 %v2169
  %2419 = vmatpush1.bf16.msra.mxu0 %v2168
  %2420 = vmatprep.subr.bf16.mxu0 %v2185
  %2421 = vmatpush1.bf16.msra.mxu0 %v2184
  %2422 = vmatprep.subr.bf16.mxu0 %v2201
  %2423 = vmatpush1.bf16.msra.mxu0 %v2200
  %2424 = vmatprep.subr.bf16.mxu0 %v2217
  %2425 = vmatpush1.bf16.msra.mxu0 %v2216
  %2426 = vmatprep.subr.bf16.mxu0 %v2269
  %2427 = vmatpush1.bf16.msra.mxu0 %v2266
  %2428 = vmatprep.subr.bf16.mxu0 0
  %2429 = vmatpush1.bf16.msra.mxu0 0
  %2430 = vmatprep.subr.bf16.mxu0 0
  %2431 = vmatpush1.bf16.msra.mxu0 0
  %2432 = vmatprep.subr.bf16.mxu0 0
  %2433 = vmatpush1.bf16.msra.mxu0 0
  %2434 = vmatprep.subr.bf16.mxu0 0
  %2435 = vmatpush1.bf16.msra.mxu0 0
  %2436 = vmatprep.subr.bf16.mxu0 0
  %2437 = vmatpush1.bf16.msra.mxu0 0
  %2438 = vmatprep.subr.bf16.mxu0 0
  %2439 = vmatpush1.bf16.msra.mxu0 0
  %2440 = vmatprep.subr.bf16.mxu0 0
  %2441 = vmatpush1.bf16.msra.mxu0 0
  %2442 = vmatprep.subr.bf16.mxu0 0
  %2443 = vmatpush1.bf16.msra.mxu0 0
  %2444 = vmatprep.subr.bf16.mxu0 0
  %2445 = vmatpush1.bf16.msra.mxu0 0
  %2446 = vmatprep.subr.bf16.mxu0 0
  %2447 = vmatpush1.bf16.msra.mxu0 0
  %2448 = vmatprep.subr.bf16.mxu0 0
  %2449 = vmatpush1.bf16.msra.mxu0 0
  %2450 = vmatprep.mubr.bf16.mxu0 0
  %2451 = vmatmul.mubr.bf16.gmra.mrb[0].mxu0 %v2244
  %v2452 = vpop.f32.mrb[0].mxu0
  %v2453 = vadd.f32 0.0, %v2452
  %v2454 = vpop.f32.mrb[0].mxu0
  %v2455 = vadd.f32 0.0, %v2454
  %v2456 = vpop.f32.mrb[0].mxu0
  %v2457 = vpop.f32.mrb[0].mxu0
  %2458 = vdwg.mxu0
  %2459 = vmatprep.subr.bf16.mxu0 %v2171
  %2460 = vmatpush1.bf16.msra.mxu0 %v2170
  %2461 = vmatprep.subr.bf16.mxu0 %v2187
  %2462 = vmatpush1.bf16.msra.mxu0 %v2186
  %2463 = vmatprep.subr.bf16.mxu0 %v2203
  %2464 = vmatpush1.bf16.msra.mxu0 %v2202
  %2465 = vmatprep.subr.bf16.mxu0 %v2219
  %2466 = vmatpush1.bf16.msra.mxu0 %v2218
  %2467 = vmatprep.subr.bf16.mxu0 %v2275
  %2468 = vmatpush1.bf16.msra.mxu0 %v2272
  %2469 = vmatprep.subr.bf16.mxu0 0
  %2470 = vmatpush1.bf16.msra.mxu0 0
  %2471 = vmatprep.subr.bf16.mxu0 0
  %2472 = vmatpush1.bf16.msra.mxu0 0
  %2473 = vmatprep.subr.bf16.mxu0 0
  %2474 = vmatpush1.bf16.msra.mxu0 0
  %2475 = vmatprep.subr.bf16.mxu0 0
  %2476 = vmatpush1.bf16.msra.mxu0 0
  %2477 = vmatprep.subr.bf16.mxu0 0
  %2478 = vmatpush1.bf16.msra.mxu0 0
  %2479 = vmatprep.subr.bf16.mxu0 0
  %2480 = vmatpush1.bf16.msra.mxu0 0
  %2481 = vmatprep.subr.bf16.mxu0 0
  %2482 = vmatpush1.bf16.msra.mxu0 0
  %2483 = vmatprep.subr.bf16.mxu0 0
  %2484 = vmatpush1.bf16.msra.mxu0 0
  %2485 = vmatprep.subr.bf16.mxu0 0
  %2486 = vmatpush1.bf16.msra.mxu0 0
  %2487 = vmatprep.subr.bf16.mxu0 0
  %2488 = vmatpush1.bf16.msra.mxu0 0
  %2489 = vmatprep.subr.bf16.mxu0 0
  %2490 = vmatpush1.bf16.msra.mxu0 0
  %2491 = vmatprep.mubr.bf16.mxu0 0
  %2492 = vmatmul.mubr.bf16.gmra.mrb[0].mxu0 %v2244
  %v2493 = vpop.f32.mrb[0].mxu0
  %v2494 = vadd.f32 0.0, %v2493
  %v2495 = vpop.f32.mrb[0].mxu0
  %v2496 = vadd.f32 0.0, %v2495
  %v2497 = vpop.f32.mrb[0].mxu0
  %v2498 = vpop.f32.mrb[0].mxu0
  %2499 = vdwg.mxu0
  %2500 = vmatprep.subr.bf16.mxu0 %v2173
  %2501 = vmatpush1.bf16.msra.mxu0 %v2172
  %2502 = vmatprep.subr.bf16.mxu0 %v2189
  %2503 = vmatpush1.bf16.msra.mxu0 %v2188
  %2504 = vmatprep.subr.bf16.mxu0 %v2205
  %2505 = vmatpush1.bf16.msra.mxu0 %v2204
  %2506 = vmatprep.subr.bf16.mxu0 %v2221
  %2507 = vmatpush1.bf16.msra.mxu0 %v2220
  %2508 = vmatprep.subr.bf16.mxu0 %v2281
  %2509 = vmatpush1.bf16.msra.mxu0 %v2278
  %2510 = vmatprep.subr.bf16.mxu0 0
  %2511 = vmatpush1.bf16.msra.mxu0 0
  %2512 = vmatprep.subr.bf16.mxu0 0
  %2513 = vmatpush1.bf16.msra.mxu0 0
  %2514 = vmatprep.subr.bf16.mxu0 0
  %2515 = vmatpush1.bf16.msra.mxu0 0
  %2516 = vmatprep.subr.bf16.mxu0 0
  %2517 = vmatpush1.bf16.msra.mxu0 0
  %2518 = vmatprep.subr.bf16.mxu0 0
  %2519 = vmatpush1.bf16.msra.mxu0 0
  %2520 = vmatprep.subr.bf16.mxu0 0
  %2521 = vmatpush1.bf16.msra.mxu0 0
  %2522 = vmatprep.subr.bf16.mxu0 0
  %2523 = vmatpush1.bf16.msra.mxu0 0
  %2524 = vmatprep.subr.bf16.mxu0 0
  %2525 = vmatpush1.bf16.msra.mxu0 0
  %2526 = vmatprep.subr.bf16.mxu0 0
  %2527 = vmatpush1.bf16.msra.mxu0 0
  %2528 = vmatprep.subr.bf16.mxu0 0
  %2529 = vmatpush1.bf16.msra.mxu0 0
  %2530 = vmatprep.subr.bf16.mxu0 0
  %2531 = vmatpush1.bf16.msra.mxu0 0
  %2532 = vmatprep.mubr.bf16.mxu0 0
  %2533 = vmatmul.mubr.bf16.gmra.mrb[0].mxu0 %v2244
  %v2534 = vpop.f32.mrb[0].mxu0
  %v2535 = vadd.f32 0.0, %v2534
  %v2536 = vpop.f32.mrb[0].mxu0
  %v2537 = vadd.f32 0.0, %v2536
  %v2538 = vpop.f32.mrb[0].mxu0
  %v2539 = vpop.f32.mrb[0].mxu0
  %2540 = vdwg.mxu0
  %2541 = vmatprep.subr.bf16.mxu0 %v2175
  %2542 = vmatpush1.bf16.msra.mxu0 %v2174
  %2543 = vmatprep.subr.bf16.mxu0 %v2191
  %2544 = vmatpush1.bf16.msra.mxu0 %v2190
  %2545 = vmatprep.subr.bf16.mxu0 %v2207
  %2546 = vmatpush1.bf16.msra.mxu0 %v2206
  %2547 = vmatprep.subr.bf16.mxu0 %v2223
  %2548 = vmatpush1.bf16.msra.mxu0 %v2222
  %2549 = vmatprep.subr.bf16.mxu0 %v2287
  %2550 = vmatpush1.bf16.msra.mxu0 %v2284
  %2551 = vmatprep.subr.bf16.mxu0 0
  %2552 = vmatpush1.bf16.msra.mxu0 0
  %2553 = vmatprep.subr.bf16.mxu0 0
  %2554 = vmatpush1.bf16.msra.mxu0 0
  %2555 = vmatprep.subr.bf16.mxu0 0
  %2556 = vmatpush1.bf16.msra.mxu0 0
  %2557 = vmatprep.subr.bf16.mxu0 0
  %2558 = vmatpush1.bf16.msra.mxu0 0
  %2559 = vmatprep.subr.bf16.mxu0 0
  %2560 = vmatpush1.bf16.msra.mxu0 0
  %2561 = vmatprep.subr.bf16.mxu0 0
  %2562 = vmatpush1.bf16.msra.mxu0 0
  %2563 = vmatprep.subr.bf16.mxu0 0
  %2564 = vmatpush1.bf16.msra.mxu0 0
  %2565 = vmatprep.subr.bf16.mxu0 0
  %2566 = vmatpush1.bf16.msra.mxu0 0
  %2567 = vmatprep.subr.bf16.mxu0 0
  %2568 = vmatpush1.bf16.msra.mxu0 0
  %2569 = vmatprep.subr.bf16.mxu0 0
  %2570 = vmatpush1.bf16.msra.mxu0 0
  %2571 = vmatprep.subr.bf16.mxu0 0
  %2572 = vmatpush1.bf16.msra.mxu0 0
  %2573 = vmatprep.mubr.bf16.mxu0 0
  %2574 = vmatmul.mubr.bf16.gmra.mrb[0].mxu0 %v2244
  %v2575 = vpop.f32.mrb[0].mxu0
  %v2576 = vadd.f32 0.0, %v2575
  %v2577 = vpop.f32.mrb[0].mxu0
  %v2578 = vadd.f32 0.0, %v2577
  %v2579 = vpop.f32.mrb[0].mxu0
  %v2580 = vpop.f32.mrb[0].mxu0
  %2581 = vdwg.mxu0
  %2582 = vmatprep.subr.bf16.mxu0 %v2177
  %2583 = vmatpush1.bf16.msra.mxu0 %v2176
  %2584 = vmatprep.subr.bf16.mxu0 %v2193
  %2585 = vmatpush1.bf16.msra.mxu0 %v2192
  %2586 = vmatprep.subr.bf16.mxu0 %v2209
  %2587 = vmatpush1.bf16.msra.mxu0 %v2208
  %2588 = vmatprep.subr.bf16.mxu0 %v2225
  %2589 = vmatpush1.bf16.msra.mxu0 %v2224
  %2590 = vmatprep.subr.bf16.mxu0 %v2293
  %2591 = vmatpush1.bf16.msra.mxu0 %v2290
  %2592 = vmatprep.subr.bf16.mxu0 0
  %2593 = vmatpush1.bf16.msra.mxu0 0
  %2594 = vmatprep.subr.bf16.mxu0 0
  %2595 = vmatpush1.bf16.msra.mxu0 0
  %2596 = vmatprep.subr.bf16.mxu0 0
  %2597 = vmatpush1.bf16.msra.mxu0 0
  %2598 = vmatprep.subr.bf16.mxu0 0
  %2599 = vmatpush1.bf16.msra.mxu0 0
  %2600 = vmatprep.subr.bf16.mxu0 0
  %2601 = vmatpush1.bf16.msra.mxu0 0
  %2602 = vmatprep.subr.bf16.mxu0 0
  %2603 = vmatpush1.bf16.msra.mxu0 0
  %2604 = vmatprep.subr.bf16.mxu0 0
  %2605 = vmatpush1.bf16.msra.mxu0 0
  %2606 = vmatprep.subr.bf16.mxu0 0
  %2607 = vmatpush1.bf16.msra.mxu0 0
  %2608 = vmatprep.subr.bf16.mxu0 0
  %2609 = vmatpush1.bf16.msra.mxu0 0
  %2610 = vmatprep.subr.bf16.mxu0 0
  %2611 = vmatpush1.bf16.msra.mxu0 0
  %2612 = vmatprep.subr.bf16.mxu0 0
  %2613 = vmatpush1.bf16.msra.mxu0 0
  %2614 = vmatprep.mubr.bf16.mxu0 0
  %2615 = vmatmul.mubr.bf16.gmra.mrb[0].mxu0 %v2244
  %v2616 = vpop.f32.mrb[0].mxu0
  %v2617 = vadd.f32 0.0, %v2616
  %v2618 = vpop.f32.mrb[0].mxu0
  %v2619 = vadd.f32 0.0, %v2618
  %v2620 = vpop.f32.mrb[0].mxu0
  %v2621 = vpop.f32.mrb[0].mxu0
  %2622 = vdwg.mxu0
  %v2623 = vadd.f32 %v2330, %v2332
  %v2624 = vadd.f32 %v2623, %v2371
  %v2625 = vadd.f32 %v2624, %v2373
  %v2626 = vadd.f32 %v2625, %v2412
  %v2627 = vadd.f32 %v2626, %v2414
  %v2628 = vadd.f32 %v2627, %v2453
  %v2629 = vadd.f32 %v2628, %v2455
  %v2630 = vadd.f32 %v2629, %v2494
  %v2631 = vadd.f32 %v2630, %v2496
  %v2632 = vadd.f32 %v2631, %v2535
  %v2633 = vadd.f32 %v2632, %v2537
  %v2634 = vadd.f32 %v2633, %v2576
  %v2635 = vadd.f32 %v2634, %v2578
  %v2636 = vadd.f32 %v2635, %v2617
  %v2637 = vadd.f32 %v2636, %v2619
  %2638 = vadd.xlane.f32.xlu0 %v2637
  %v2639 = vpop.xlane.xlu0 %2638
  %v2640 = vmul.f32 %v2639, 0.00048828125
  %v2641 = vmul.f32 %v2330, %v2330
  %v2642 = vmul.f32 %v2332, %v2332
  %v2643 = vmul.f32 %v2371, %v2371
  %v2644 = vmul.f32 %v2373, %v2373
  %v2645 = vmul.f32 %v2412, %v2412
  %v2646 = vmul.f32 %v2414, %v2414
  %v2647 = vmul.f32 %v2453, %v2453
  %v2648 = vmul.f32 %v2455, %v2455
  %v2649 = vmul.f32 %v2494, %v2494
  %v2650 = vmul.f32 %v2496, %v2496
  %v2651 = vmul.f32 %v2535, %v2535
  %v2652 = vmul.f32 %v2537, %v2537
  %v2653 = vmul.f32 %v2576, %v2576
  %v2654 = vmul.f32 %v2578, %v2578
  %v2655 = vmul.f32 %v2617, %v2617
  %v2656 = vmul.f32 %v2619, %v2619
  %v2657 = vadd.f32 %v2641, %v2642
  %v2658 = vadd.f32 %v2657, %v2643
  %v2659 = vadd.f32 %v2658, %v2644
  %v2660 = vadd.f32 %v2659, %v2645
  %v2661 = vadd.f32 %v2660, %v2646
  %v2662 = vadd.f32 %v2661, %v2647
  %v2663 = vadd.f32 %v2662, %v2648
  %v2664 = vadd.f32 %v2663, %v2649
  %v2665 = vadd.f32 %v2664, %v2650
  %v2666 = vadd.f32 %v2665, %v2651
  %v2667 = vadd.f32 %v2666, %v2652
  %v2668 = vadd.f32 %v2667, %v2653
  %v2669 = vadd.f32 %v2668, %v2654
  %v2670 = vadd.f32 %v2669, %v2655
  %v2671 = vadd.f32 %v2670, %v2656
  %2672 = vadd.xlane.f32.xlu0 %v2671
  %v2673 = vpop.xlane.xlu0 %2672
  %v2674 = vmul.f32 %v2673, 0.00048828125
  %v2675 = vmul.f32 %v2640, %v2640
  %v2676 = vsub.f32 %v2674, %v2675
  %v2677 = vld [vmem:[%s3] sm:$0xff]
  %v2678 = vadd.f32 %v2676, 1e-05
  %v2679 = vrsqrt.pop %v2678
  %v2680 = vmul.f32 %v2677, %v2679
  %v2681 = vld [vmem:[%s4] sm:$0xff]
  %v2682 = vmul.f32 %v2640, %v2680
  %v2683 = vsub.f32 %v2681, %v2682
  %2685 = vset.pattern.permute.xlu0 0
  %2686 = vperm.xlu0 %2685, %v2680
  %v2687 = vpop.permute.xlu0 %2686
  %v2689 = vmul.f32 %v2330, %v2687
  %v2690 = vmul.f32 %v2332, %v2687
  %v2691 = vmul.f32 %v2371, %v2687
  %v2692 = vmul.f32 %v2373, %v2687
  %v2693 = vmul.f32 %v2412, %v2687
  %v2694 = vmul.f32 %v2414, %v2687
  %v2695 = vmul.f32 %v2453, %v2687
  %v2696 = vmul.f32 %v2455, %v2687
  %v2697 = vmul.f32 %v2494, %v2687
  %v2698 = vmul.f32 %v2496, %v2687
  %v2699 = vmul.f32 %v2535, %v2687
  %v2700 = vmul.f32 %v2537, %v2687
  %v2701 = vmul.f32 %v2576, %v2687
  %v2702 = vmul.f32 %v2578, %v2687
  %v2703 = vmul.f32 %v2617, %v2687
  %v2704 = vmul.f32 %v2619, %v2687
  %2706 = vset.pattern.permute.xlu0 0
  %2707 = vperm.xlu0 %2706, %v2683
  %v2708 = vpop.permute.xlu0 %2707
  %v2710 = vadd.f32 %v2689, %v2708
  %v2711 = vadd.f32 %v2690, %v2708
  %v2712 = vadd.f32 %v2691, %v2708
  %v2713 = vadd.f32 %v2692, %v2708
  %v2714 = vadd.f32 %v2693, %v2708
  %v2715 = vadd.f32 %v2694, %v2708
  %v2716 = vadd.f32 %v2695, %v2708
  %v2717 = vadd.f32 %v2696, %v2708
  %v2718 = vadd.f32 %v2697, %v2708
  %v2719 = vadd.f32 %v2698, %v2708
  %v2720 = vadd.f32 %v2699, %v2708
  %v2721 = vadd.f32 %v2700, %v2708
  %v2722 = vadd.f32 %v2701, %v2708
  %v2723 = vadd.f32 %v2702, %v2708
  %v2724 = vadd.f32 %v2703, %v2708
  %v2725 = vadd.f32 %v2704, %v2708
  %v2726 = vmax.f32 %v2710, 0.0
  %v2727 = vmax.f32 %v2711, 0.0
  %v2728 = vmax.f32 %v2712, 0.0
  %v2729 = vmax.f32 %v2713, 0.0
  %v2730 = vmax.f32 %v2714, 0.0
  %v2731 = vmax.f32 %v2715, 0.0
  %v2732 = vmax.f32 %v2716, 0.0
  %v2733 = vmax.f32 %v2717, 0.0
  %v2734 = vmax.f32 %v2718, 0.0
  %v2735 = vmax.f32 %v2719, 0.0
  %v2736 = vmax.f32 %v2720, 0.0
  %v2737 = vmax.f32 %v2721, 0.0
  %v2738 = vmax.f32 %v2722, 0.0
  %v2739 = vmax.f32 %v2723, 0.0
  %v2740 = vmax.f32 %v2724, 0.0
  %v2741 = vmax.f32 %v2725, 0.0
  %2742 = vst [vmem:[%s5] sm:$0xff] %v2726
  %2743 = vst [vmem:[%s5 + $0x8] sm:$0xff] %v2727
  %2744 = vst [vmem:[%s5 + $0x10] sm:$0xff] %v2728
  %2745 = vst [vmem:[%s5 + $0x18] sm:$0xff] %v2729
  %2746 = vst [vmem:[%s5 + $0x20] sm:$0xff] %v2730
  %2747 = vst [vmem:[%s5 + $0x28] sm:$0xff] %v2731
  %2748 = vst [vmem:[%s5 + $0x30] sm:$0xff] %v2732
  %2749 = vst [vmem:[%s5 + $0x38] sm:$0xff] %v2733
  %2750 = vst [vmem:[%s5 + $0x40] sm:$0xff] %v2734
  %2751 = vst [vmem:[%s5 + $0x48] sm:$0xff] %v2735
  %2752 = vst [vmem:[%s5 + $0x50] sm:$0xff] %v2736
  %2753 = vst [vmem:[%s5 + $0x58] sm:$0xff] %v2737
  %2754 = vst [vmem:[%s5 + $0x60] sm:$0xff] %v2738
  %2755 = vst [vmem:[%s5 + $0x68] sm:$0xff] %v2739
  %2756 = vst [vmem:[%s5 + $0x70] sm:$0xff] %v2740
  %2757 = vst [vmem:[%s5 + $0x78] sm:$0xff] %v2741
  // Predicated region
  $region22: #{upblock_forward.1} parent=0 // pred_check
    _
  $region23: #{upblock_forward.1} parent=0 // pred_check_branch
    %2759 = sbr.rel (0) target = $region25
  $region24: #{upblock_forward.1} parent=0 // pred_region
    _
  $region25: #{upblock_forward.1} parent=0 // pred_fallthru
    _
  // Predicated region
  $region26: #{upblock_forward.1} parent=0 // pred_check
    _
  $region27: #{upblock_forward.1} parent=0 // pred_check_branch
    %2761 = sbr.rel (0) target = $region29
  $region28: #{upblock_forward.1} parent=0 // pred_region
    _
  $region29: #{upblock_forward.1} parent=0 // pred_fallthru
    _

</llo_original>
